<compile_context>
chip_gen: v6e
topology: v6e:2x2x1
jax: 0.10.0
libtpu: 0.0.40
codegen_flags: <defaults>
</compile_context>

<pallas_src>
import functools

import jax
import jax.numpy as jnp
from jax import lax
from jax.experimental import pallas as pl
from jax.experimental.pallas import tpu as pltpu


def rnn_kernel(lens_ref, x_ref, wih_ref, whh_ref, b_ref, wd_ref, bd_ref,
               out_ref, h_scr, c_scr, xg_scr, *, n_labels):
    """One grid step processes one time-chunk of the recurrence.

    lens_ref : [Bp, 1]        int32 sorted lengths (0 for batch padding)
    x_ref    : [Tc*Bp, F]     time-major inputs for this chunk (row = t*Bp + b)
    wih_ref  : [F, 4H]        W_ih^T, gate columns reordered (i, f, o, g)
    whh_ref  : [H, 4H]        W_hh^T, same column order
    b_ref    : [1, 4H]        b_ih + b_hh, same column order
    wd_ref   : [H, Lp]        dense weight^T, zero-padded to lane width
    bd_ref   : [1, Lp]        dense bias, zero-padded
    out_ref  : [Bp, Lp]       log_softmax(relu(dense(ht))), lane padded
    h_scr/c_scr : [Bp, H]     recurrent state carried across grid steps
    xg_scr   : [Tc*Bp, 4H]    per-chunk precomputed input projection
    """
    Bp, H = h_scr.shape
    Tc = x_ref.shape[0] // Bp
    tc = pl.program_id(0)

    @pl.when(tc == 0)
    def _init():
        h_scr[...] = jnp.zeros_like(h_scr)
        c_scr[...] = jnp.zeros_like(c_scr)

    # Input projection for the whole chunk in ONE GEMM (off the recurrence
    # critical path); bias folded in so the loop body has no broadcast.
    xg_scr[...] = (jnp.dot(x_ref[...], wih_ref[...],
                           preferred_element_type=jnp.float32) + b_ref[...])

    # Loop-invariant loads hoisted out of the recurrence.
    whh = whh_ref[...]            # [H, 4H]
    lens = lens_ref[...]          # [Bp, 1] int32
    t0 = tc * Tc

    def step(i, carry):
        h, c = carry
        row = pl.multiple_of(i * Bp, Bp)
        g = xg_scr[pl.ds(row, Bp), :] + jnp.dot(
            h, whh, preferred_element_type=jnp.float32)          # [Bp, 4H]
        # Gates reordered in the wrapper: one contiguous sigmoid slab (i,f,o)
        # and one tanh slab (g).
        s = jax.nn.sigmoid(g[:, : 3 * H])
        gg = jnp.tanh(g[:, 3 * H:])
        i_g = s[:, :H]
        f_g = s[:, H:2 * H]
        o_g = s[:, 2 * H:]
        c_new = f_g * c + i_g * gg
        h_new = o_g * jnp.tanh(c_new)
        # packed-sequence semantics: state frozen once t >= length, so the
        # final h == ht (last valid hidden state per sequence).
        keep = (t0 + i) < lens                                    # [Bp, 1]
        h = jnp.where(keep, h_new, h)
        c = jnp.where(keep, c_new, c)
        return h, c

    h, c = lax.fori_loop(0, Tc, step, (h_scr[...], c_scr[...]), unroll=True)
    h_scr[...] = h
    c_scr[...] = c

    @pl.when(tc == pl.num_programs(0) - 1)
    def _final():
        logits = jnp.dot(h, wd_ref[...],
                         preferred_element_type=jnp.float32) + bd_ref[...]
        act = jnp.maximum(logits, 0.0)                            # ReLU
        # Mask the lane padding so it cannot contribute to the softmax.
        col = lax.broadcasted_iota(jnp.int32, act.shape, 1)
        act = jnp.where(col < n_labels, act, jnp.float32(-1e30))
        m = jnp.max(act, axis=1, keepdims=True)
        z = act - m
        lse = jnp.log(jnp.sum(jnp.exp(z), axis=1, keepdims=True))
        out_ref[...] = z - lse                                    # LogSoftmax


def rnn_forward(x, lengths, params, *, t_chunk=8):
    """x: [B, T, F] batch-first (PyTorch convention); lengths: [B] int32.

    Returns [B, nlabels] in sorted (descending-length) batch order, matching
    the PyTorch forward's use of ht from the packed sequence.
    """
    B, T, F = x.shape
    H = params["w_hh"].shape[1]        # w_hh: [4H, H]
    L = params["w_d"].shape[0]         # w_d : [L, H]
    G = 4 * H

    Bp = ((B + 7) // 8) * 8            # pad batch to f32 sublane quantum
    Lp = ((L + 127) // 128) * 128      # pad labels to lane width (dense store)
    Tc = max(1, min(t_chunk, T))
    Tp = ((T + Tc - 1) // Tc) * Tc     # pad time to a multiple of the chunk

    # mirrors: seq_lengths, perm_idx = l.sort(0, descending=True); xx = x[perm_idx]
    perm = jnp.argsort(-lengths)
    lens_sorted = lengths[perm].astype(jnp.int32)
    x_sorted = x[perm]                                   # [B, T, F]
    # TODO(synk): fold the sort-gather + transpose into the kernel (scalar-prefetch
    # index_map / DMA gather) to avoid the extra HBM round trip of x at large sizes.

    x_p = jnp.zeros((Bp, Tp, F), jnp.float32).at[:B, :T].set(x_sorted)
    lens_p = jnp.zeros((Bp,), jnp.int32).at[:B].set(lens_sorted)[:, None]  # [Bp,1]
    x_tm = jnp.transpose(x_p, (1, 0, 2)).reshape(Tp * Bp, F)  # time-major, 2-D

    def reorder(w):
        # PyTorch gate order along dim 0 is (i, f, g, o); reorder to (i, f, o, g)
        # so the kernel can sigmoid one contiguous [:, :3H] slab.
        return jnp.concatenate([w[:2 * H], w[3 * H:], w[2 * H:3 * H]], axis=0)

    # TODO(synk): for large H on v6e/v7x, cast matmul operands to bf16 (keep f32
    # accumulate); keep f32 elementwise on v5e (no bf16 VPU/EUP there).
    wih_t = reorder(params["w_ih"]).T.astype(jnp.float32)        # [F, 4H]
    whh_t = reorder(params["w_hh"]).T.astype(jnp.float32)        # [H, 4H]
    b = reorder(params["b_ih"] + params["b_hh"])[None, :].astype(jnp.float32)
    wd_t = jnp.zeros((H, Lp), jnp.float32).at[:, :L].set(params["w_d"].T)
    bd = jnp.zeros((1, Lp), jnp.float32).at[0, :L].set(params["b_d"])

    kernel = functools.partial(rnn_kernel, n_labels=L)

    out = pl.pallas_call(
        kernel,
        out_shape=jax.ShapeDtypeStruct((Bp, Lp), jnp.float32),
        grid_spec=pltpu.PrefetchScalarGridSpec(
            num_scalar_prefetch=0,
            grid=(Tp // Tc,),
            in_specs=[
                pl.BlockSpec((Bp, 1), lambda t: (0, 0)),          # lengths
                pl.BlockSpec((Tc * Bp, F), lambda t: (t, 0)),     # x time-chunk
                pl.BlockSpec((F, G), lambda t: (0, 0)),           # W_ih^T
                pl.BlockSpec((H, G), lambda t: (0, 0)),           # W_hh^T
                pl.BlockSpec((1, G), lambda t: (0, 0)),           # bias
                pl.BlockSpec((H, Lp), lambda t: (0, 0)),          # dense W^T
                pl.BlockSpec((1, Lp), lambda t: (0, 0)),          # dense bias
            ],
            out_specs=pl.BlockSpec((Bp, Lp), lambda t: (0, 0)),
            scratch_shapes=[pltpu.VMEM((Bp, H), jnp.float32),      # h
                            pltpu.VMEM((Bp, H), jnp.float32),      # c
                            pltpu.VMEM((Tc * Bp, G), jnp.float32)  # x @ W_ih^T + b
                            ],
        ),
        compiler_params=pltpu.CompilerParams(
            dimension_semantics=("arbitrary",)),
    )(lens_p, x_tm, wih_t, whh_t, b, wd_t, bd)
    return out[:B, :L]


def _reference_forward(x, lengths, params):
    """Pure-JAX reference for validation (same math, no Pallas)."""
    B, T, F = x.shape
    H = params["w_hh"].shape[1]
    perm = jnp.argsort(-lengths)
    lens_sorted = lengths[perm]
    xs = x[perm]
    h = jnp.zeros((B, H), jnp.float32)
    c = jnp.zeros((B, H), jnp.float32)
    wih_t, whh_t = params["w_ih"].T, params["w_hh"].T
    b = params["b_ih"] + params["b_hh"]
    for t in range(T):
        g = xs[:, t, :] @ wih_t + h @ whh_t + b
        i = jax.nn.sigmoid(g[:, 0 * H:1 * H])
        f = jax.nn.sigmoid(g[:, 1 * H:2 * H])
        gg = jnp.tanh(g[:, 2 * H:3 * H])
        o = jax.nn.sigmoid(g[:, 3 * H:4 * H])
        cn = f * c + i * gg
        hn = o * jnp.tanh(cn)
        keep = (t < lens_sorted)[:, None]
        h = jnp.where(keep, hn, h)
        c = jnp.where(keep, cn, c)
    act = jnp.maximum(h @ params["w_d"].T + params["b_d"], 0.0)
    return jax.nn.log_softmax(act, axis=1)


if __name__ == "__main__":
    nfeats, hidden, nlabels = 8, 32, 6
    B, T = 4, 10

    key = jax.random.PRNGKey(0)
    ks = jax.random.split(key, 8)
    bound = 1.0 / jnp.sqrt(hidden)   # PyTorch LSTM / Linear default init range
    params = {
        "w_ih": jax.random.uniform(ks[0], (4 * hidden, nfeats), jnp.float32, -bound, bound),
        "w_hh": jax.random.uniform(ks[1], (4 * hidden, hidden), jnp.float32, -bound, bound),
        "b_ih": jax.random.uniform(ks[2], (4 * hidden,), jnp.float32, -bound, bound),
        "b_hh": jax.random.uniform(ks[3], (4 * hidden,), jnp.float32, -bound, bound),
        "w_d": jax.random.uniform(ks[4], (nlabels, hidden), jnp.float32, -bound, bound),
        "b_d": jax.random.uniform(ks[5], (nlabels,), jnp.float32, -bound, bound),
    }

    x = jax.random.normal(ks[6], (B, T, nfeats), jnp.float32)
    lengths = jax.random.randint(ks[7], (B,), 1, T + 1).astype(jnp.int32)

    out = jax.block_until_ready(rnn_forward(x, lengths, params))
    ref = _reference_forward(x, lengths, params)
    assert out.shape == (B, nlabels)
    assert jnp.allclose(out, ref, atol=1e-4, rtol=1e-4), "mismatch vs reference"
    print("KERNEL_OK")
</pallas_src>

<mosaic_0001>
module attributes {stable_mosaic.version = 11 : i64} {
  func.func @rnn_kernel(%arg0: i32, %arg1: memref<8x1xi32, #tpu.memory_space<vmem>>, %arg2: memref<64x8xf32, #tpu.memory_space<vmem>>, %arg3: memref<8x128xf32, #tpu.memory_space<vmem>>, %arg4: memref<32x128xf32, #tpu.memory_space<vmem>>, %arg5: memref<1x128xf32, #tpu.memory_space<vmem>>, %arg6: memref<32x128xf32, #tpu.memory_space<vmem>>, %arg7: memref<1x128xf32, #tpu.memory_space<vmem>>, %arg8: memref<8x128xf32, #tpu.memory_space<vmem>>, %arg9: memref<8x32xf32, #tpu.memory_space<vmem>>, %arg10: memref<8x32xf32, #tpu.memory_space<vmem>>, %arg11: memref<64x128xf32, #tpu.memory_space<vmem>>) attributes {dimension_semantics = [#tpu.dimension_semantics<arbitrary>], iteration_bounds = array<i64: 2>, scalar_prefetch = 0 : i64, scratch_operands = 3 : i64, tpu.core_type = #tpu.core_type<tc>, window_params = [{pipeline_mode = #tpu.pipeline_mode<synchronous>, transform_indices = @transform_0, window_bounds = array<i64: 8, 1>}, {transform_indices = @transform_1, window_bounds = array<i64: 64, 8>}, {pipeline_mode = #tpu.pipeline_mode<synchronous>, transform_indices = @transform_2, window_bounds = array<i64: 8, 128>}, {pipeline_mode = #tpu.pipeline_mode<synchronous>, transform_indices = @transform_3, window_bounds = array<i64: 32, 128>}, {pipeline_mode = #tpu.pipeline_mode<synchronous>, transform_indices = @transform_4, window_bounds = array<i64: 1, 128>}, {pipeline_mode = #tpu.pipeline_mode<synchronous>, transform_indices = @transform_5, window_bounds = array<i64: 32, 128>}, {pipeline_mode = #tpu.pipeline_mode<synchronous>, transform_indices = @transform_6, window_bounds = array<i64: 1, 128>}, {pipeline_mode = #tpu.pipeline_mode<synchronous>, transform_indices = @transform_7, window_bounds = array<i64: 8, 128>}]} {
    %c0_i32 = arith.constant 0 : i32
    %0 = arith.cmpi eq, %arg0, %c0_i32 : i32
    %1 = arith.extui %0 : i1 to i32
    %c0_i32_0 = arith.constant 0 : i32
    %2 = arith.cmpi ne, %1, %c0_i32_0 : i32
    scf.if %2 {
      %cst_56 = arith.constant 0.000000e+00 : f32
      %268 = vector.broadcast %cst_56 : f32 to vector<8x32xf32>
      %c0_57 = arith.constant 0 : index
      %c0_58 = arith.constant 0 : index
      %269 = vector.load %arg9[%c0_57, %c0_58] : memref<8x32xf32, #tpu.memory_space<vmem>>, vector<8x32xf32>
      tpu.vector_store %arg9[%c0_57, %c0_58], %268 {strides = array<i32>} : memref<8x32xf32, #tpu.memory_space<vmem>>, vector<8x32xf32>,
      %cst_59 = arith.constant 0.000000e+00 : f32
      %270 = vector.broadcast %cst_59 : f32 to vector<8x32xf32>
      %c0_60 = arith.constant 0 : index
      %c0_61 = arith.constant 0 : index
      %271 = vector.load %arg10[%c0_60, %c0_61] : memref<8x32xf32, #tpu.memory_space<vmem>>, vector<8x32xf32>
      tpu.vector_store %arg10[%c0_60, %c0_61], %270 {strides = array<i32>} : memref<8x32xf32, #tpu.memory_space<vmem>>, vector<8x32xf32>,
    } else {
    }
    %c0 = arith.constant 0 : index
    %c0_1 = arith.constant 0 : index
    %3 = vector.load %arg2[%c0, %c0_1] : memref<64x8xf32, #tpu.memory_space<vmem>>, vector<64x8xf32>
    %c0_2 = arith.constant 0 : index
    %c0_3 = arith.constant 0 : index
    %4 = vector.load %arg3[%c0_2, %c0_3] : memref<8x128xf32, #tpu.memory_space<vmem>>, vector<8x128xf32>
    %cst = arith.constant dense<0.000000e+00> : vector<64x128xf32>
    %5 = tpu.matmul %3, %4, %cst {dimension_numbers = #tpu.dot_dimension_numbers<[1], [0], [0], [1], [0, 0, 1, 1], [], []>} : vector<64x8xf32>, vector<8x128xf32>, vector<64x128xf32> -> vector<64x128xf32>
    %c0_4 = arith.constant 0 : index
    %c0_5 = arith.constant 0 : index
    %6 = vector.load %arg5[%c0_4, %c0_5] : memref<1x128xf32, #tpu.memory_space<vmem>>, vector<1x128xf32>
    %7 = vector.broadcast %6 : vector<1x128xf32> to vector<64x128xf32>
    %8 = arith.addf %5, %7 : vector<64x128xf32>
    %c0_6 = arith.constant 0 : index
    %c0_7 = arith.constant 0 : index
    %9 = vector.load %arg11[%c0_6, %c0_7] : memref<64x128xf32, #tpu.memory_space<vmem>>, vector<64x128xf32>
    tpu.vector_store %arg11[%c0_6, %c0_7], %8 {strides = array<i32>} : memref<64x128xf32, #tpu.memory_space<vmem>>, vector<64x128xf32>,
    %c0_8 = arith.constant 0 : index
    %c0_9 = arith.constant 0 : index
    %10 = vector.load %arg4[%c0_8, %c0_9] : memref<32x128xf32, #tpu.memory_space<vmem>>, vector<32x128xf32>
    %c0_10 = arith.constant 0 : index
    %c0_11 = arith.constant 0 : index
    %11 = vector.load %arg1[%c0_10, %c0_11] : memref<8x1xi32, #tpu.memory_space<vmem>>, vector<8x1xi32>
    %c8_i32 = arith.constant 8 : i32
    %12 = arith.muli %arg0, %c8_i32 : i32
    %c0_12 = arith.constant 0 : index
    %c0_13 = arith.constant 0 : index
    %13 = vector.load %arg9[%c0_12, %c0_13] : memref<8x32xf32, #tpu.memory_space<vmem>>, vector<8x32xf32>
    %c0_14 = arith.constant 0 : index
    %c0_15 = arith.constant 0 : index
    %14 = vector.load %arg10[%c0_14, %c0_15] : memref<8x32xf32, #tpu.memory_space<vmem>>, vector<8x32xf32>
    %c0_i32_16 = arith.constant 0 : i32
    %c8_i32_17 = arith.constant 8 : i32
    %15 = arith.muli %c0_i32_16, %c8_i32_17 : i32
    %16 = tpu.assume_multiple %15, 8 : i32
    %17 = arith.index_cast %16 : i32 to index
    %c0_18 = arith.constant 0 : index
    %18 = vector.load %arg11[%17, %c0_18] : memref<64x128xf32, #tpu.memory_space<vmem>>, vector<8x128xf32>
    %cst_19 = arith.constant dense<0.000000e+00> : vector<8x128xf32>
    %19 = tpu.matmul %13, %10, %cst_19 {dimension_numbers = #tpu.dot_dimension_numbers<[1], [0], [0], [1], [0, 0, 1, 1], [], []>} : vector<8x32xf32>, vector<32x128xf32>, vector<8x128xf32> -> vector<8x128xf32>
    %20 = arith.addf %18, %19 : vector<8x128xf32>
    %21 = vector.extract_strided_slice %20 {offsets = [0, 0], sizes = [8, 96], strides = [1, 1]} : vector<8x128xf32> to vector<8x96xf32>
    %22 = arith.negf %21 : vector<8x96xf32>
    %23 = math.exp %22 : vector<8x96xf32>
    %cst_20 = arith.constant 1.000000e+00 : f32
    %24 = vector.broadcast %cst_20 : f32 to vector<8x96xf32>
    %25 = arith.addf %24, %23 : vector<8x96xf32>
    %26 = arith.divf %24, %25 : vector<8x96xf32>
    %27 = vector.extract_strided_slice %20 {offsets = [0, 96], sizes = [8, 32], strides = [1, 1]} : vector<8x128xf32> to vector<8x32xf32>
    %28 = math.tanh %27 : vector<8x32xf32>
    %29 = vector.extract_strided_slice %26 {offsets = [0, 0], sizes = [8, 32], strides = [1, 1]} : vector<8x96xf32> to vector<8x32xf32>
    %30 = vector.extract_strided_slice %26 {offsets = [0, 32], sizes = [8, 32], strides = [1, 1]} : vector<8x96xf32> to vector<8x32xf32>
    %31 = vector.extract_strided_slice %26 {offsets = [0, 64], sizes = [8, 32], strides = [1, 1]} : vector<8x96xf32> to vector<8x32xf32>
    %32 = arith.mulf %30, %14 : vector<8x32xf32>
    %33 = arith.mulf %29, %28 : vector<8x32xf32>
    %34 = arith.addf %32, %33 : vector<8x32xf32>
    %35 = math.tanh %34 : vector<8x32xf32>
    %36 = arith.mulf %31, %35 : vector<8x32xf32>
    %37 = arith.addi %12, %c0_i32_16 : i32
    %38 = vector.broadcast %37 : i32 to vector<8x1xi32>
    %39 = arith.cmpi slt, %38, %11 : vector<8x1xi32>
    %40 = vector.shape_cast %39 : vector<8x1xi1> to vector<8x1xi1>
    %41 = vector.broadcast %40 : vector<8x1xi1> to vector<8x32xi1>
    %42 = arith.select %41, %36, %13 : vector<8x32xi1>, vector<8x32xf32>
    %43 = vector.shape_cast %39 : vector<8x1xi1> to vector<8x1xi1>
    %44 = vector.broadcast %43 : vector<8x1xi1> to vector<8x32xi1>
    %45 = arith.select %44, %34, %14 : vector<8x32xi1>, vector<8x32xf32>
    %c1_i32 = arith.constant 1 : i32
    %c8_i32_21 = arith.constant 8 : i32
    %46 = arith.muli %c1_i32, %c8_i32_21 : i32
    %47 = tpu.assume_multiple %46, 8 : i32
    %48 = arith.index_cast %47 : i32 to index
    %c0_22 = arith.constant 0 : index
    %49 = vector.load %arg11[%48, %c0_22] : memref<64x128xf32, #tpu.memory_space<vmem>>, vector<8x128xf32>
    %cst_23 = arith.constant dense<0.000000e+00> : vector<8x128xf32>
    %50 = tpu.matmul %42, %10, %cst_23 {dimension_numbers = #tpu.dot_dimension_numbers<[1], [0], [0], [1], [0, 0, 1, 1], [], []>} : vector<8x32xf32>, vector<32x128xf32>, vector<8x128xf32> -> vector<8x128xf32>
    %51 = arith.addf %49, %50 : vector<8x128xf32>
    %52 = vector.extract_strided_slice %51 {offsets = [0, 0], sizes = [8, 96], strides = [1, 1]} : vector<8x128xf32> to vector<8x96xf32>
    %53 = arith.negf %52 : vector<8x96xf32>
    %54 = math.exp %53 : vector<8x96xf32>
    %cst_24 = arith.constant 1.000000e+00 : f32
    %55 = vector.broadcast %cst_24 : f32 to vector<8x96xf32>
    %56 = arith.addf %55, %54 : vector<8x96xf32>
    %57 = arith.divf %55, %56 : vector<8x96xf32>
    %58 = vector.extract_strided_slice %51 {offsets = [0, 96], sizes = [8, 32], strides = [1, 1]} : vector<8x128xf32> to vector<8x32xf32>
    %59 = math.tanh %58 : vector<8x32xf32>
    %60 = vector.extract_strided_slice %57 {offsets = [0, 0], sizes = [8, 32], strides = [1, 1]} : vector<8x96xf32> to vector<8x32xf32>
    %61 = vector.extract_strided_slice %57 {offsets = [0, 32], sizes = [8, 32], strides = [1, 1]} : vector<8x96xf32> to vector<8x32xf32>
    %62 = vector.extract_strided_slice %57 {offsets = [0, 64], sizes = [8, 32], strides = [1, 1]} : vector<8x96xf32> to vector<8x32xf32>
    %63 = arith.mulf %61, %45 : vector<8x32xf32>
    %64 = arith.mulf %60, %59 : vector<8x32xf32>
    %65 = arith.addf %63, %64 : vector<8x32xf32>
    %66 = math.tanh %65 : vector<8x32xf32>
    %67 = arith.mulf %62, %66 : vector<8x32xf32>
    %68 = arith.addi %12, %c1_i32 : i32
    %69 = vector.broadcast %68 : i32 to vector<8x1xi32>
    %70 = arith.cmpi slt, %69, %11 : vector<8x1xi32>
    %71 = vector.shape_cast %70 : vector<8x1xi1> to vector<8x1xi1>
    %72 = vector.broadcast %71 : vector<8x1xi1> to vector<8x32xi1>
    %73 = arith.select %72, %67, %42 : vector<8x32xi1>, vector<8x32xf32>
    %74 = vector.shape_cast %70 : vector<8x1xi1> to vector<8x1xi1>
    %75 = vector.broadcast %74 : vector<8x1xi1> to vector<8x32xi1>
    %76 = arith.select %75, %65, %45 : vector<8x32xi1>, vector<8x32xf32>
    %c2_i32 = arith.constant 2 : i32
    %c8_i32_25 = arith.constant 8 : i32
    %77 = arith.muli %c2_i32, %c8_i32_25 : i32
    %78 = tpu.assume_multiple %77, 8 : i32
    %79 = arith.index_cast %78 : i32 to index
    %c0_26 = arith.constant 0 : index
    %80 = vector.load %arg11[%79, %c0_26] : memref<64x128xf32, #tpu.memory_space<vmem>>, vector<8x128xf32>
    %cst_27 = arith.constant dense<0.000000e+00> : vector<8x128xf32>
    %81 = tpu.matmul %73, %10, %cst_27 {dimension_numbers = #tpu.dot_dimension_numbers<[1], [0], [0], [1], [0, 0, 1, 1], [], []>} : vector<8x32xf32>, vector<32x128xf32>, vector<8x128xf32> -> vector<8x128xf32>
    %82 = arith.addf %80, %81 : vector<8x128xf32>
    %83 = vector.extract_strided_slice %82 {offsets = [0, 0], sizes = [8, 96], strides = [1, 1]} : vector<8x128xf32> to vector<8x96xf32>
    %84 = arith.negf %83 : vector<8x96xf32>
    %85 = math.exp %84 : vector<8x96xf32>
    %cst_28 = arith.constant 1.000000e+00 : f32
    %86 = vector.broadcast %cst_28 : f32 to vector<8x96xf32>
    %87 = arith.addf %86, %85 : vector<8x96xf32>
    %88 = arith.divf %86, %87 : vector<8x96xf32>
    %89 = vector.extract_strided_slice %82 {offsets = [0, 96], sizes = [8, 32], strides = [1, 1]} : vector<8x128xf32> to vector<8x32xf32>
    %90 = math.tanh %89 : vector<8x32xf32>
    %91 = vector.extract_strided_slice %88 {offsets = [0, 0], sizes = [8, 32], strides = [1, 1]} : vector<8x96xf32> to vector<8x32xf32>
    %92 = vector.extract_strided_slice %88 {offsets = [0, 32], sizes = [8, 32], strides = [1, 1]} : vector<8x96xf32> to vector<8x32xf32>
    %93 = vector.extract_strided_slice %88 {offsets = [0, 64], sizes = [8, 32], strides = [1, 1]} : vector<8x96xf32> to vector<8x32xf32>
    %94 = arith.mulf %92, %76 : vector<8x32xf32>
    %95 = arith.mulf %91, %90 : vector<8x32xf32>
    %96 = arith.addf %94, %95 : vector<8x32xf32>
    %97 = math.tanh %96 : vector<8x32xf32>
    %98 = arith.mulf %93, %97 : vector<8x32xf32>
    %99 = arith.addi %12, %c2_i32 : i32
    %100 = vector.broadcast %99 : i32 to vector<8x1xi32>
    %101 = arith.cmpi slt, %100, %11 : vector<8x1xi32>
    %102 = vector.shape_cast %101 : vector<8x1xi1> to vector<8x1xi1>
    %103 = vector.broadcast %102 : vector<8x1xi1> to vector<8x32xi1>
    %104 = arith.select %103, %98, %73 : vector<8x32xi1>, vector<8x32xf32>
    %105 = vector.shape_cast %101 : vector<8x1xi1> to vector<8x1xi1>
    %106 = vector.broadcast %105 : vector<8x1xi1> to vector<8x32xi1>
    %107 = arith.select %106, %96, %76 : vector<8x32xi1>, vector<8x32xf32>
    %c3_i32 = arith.constant 3 : i32
    %c8_i32_29 = arith.constant 8 : i32
    %108 = arith.muli %c3_i32, %c8_i32_29 : i32
    %109 = tpu.assume_multiple %108, 8 : i32
    %110 = arith.index_cast %109 : i32 to index
    %c0_30 = arith.constant 0 : index
    %111 = vector.load %arg11[%110, %c0_30] : memref<64x128xf32, #tpu.memory_space<vmem>>, vector<8x128xf32>
    %cst_31 = arith.constant dense<0.000000e+00> : vector<8x128xf32>
    %112 = tpu.matmul %104, %10, %cst_31 {dimension_numbers = #tpu.dot_dimension_numbers<[1], [0], [0], [1], [0, 0, 1, 1], [], []>} : vector<8x32xf32>, vector<32x128xf32>, vector<8x128xf32> -> vector<8x128xf32>
    %113 = arith.addf %111, %112 : vector<8x128xf32>
    %114 = vector.extract_strided_slice %113 {offsets = [0, 0], sizes = [8, 96], strides = [1, 1]} : vector<8x128xf32> to vector<8x96xf32>
    %115 = arith.negf %114 : vector<8x96xf32>
    %116 = math.exp %115 : vector<8x96xf32>
    %cst_32 = arith.constant 1.000000e+00 : f32
    %117 = vector.broadcast %cst_32 : f32 to vector<8x96xf32>
    %118 = arith.addf %117, %116 : vector<8x96xf32>
    %119 = arith.divf %117, %118 : vector<8x96xf32>
    %120 = vector.extract_strided_slice %113 {offsets = [0, 96], sizes = [8, 32], strides = [1, 1]} : vector<8x128xf32> to vector<8x32xf32>
    %121 = math.tanh %120 : vector<8x32xf32>
    %122 = vector.extract_strided_slice %119 {offsets = [0, 0], sizes = [8, 32], strides = [1, 1]} : vector<8x96xf32> to vector<8x32xf32>
    %123 = vector.extract_strided_slice %119 {offsets = [0, 32], sizes = [8, 32], strides = [1, 1]} : vector<8x96xf32> to vector<8x32xf32>
    %124 = vector.extract_strided_slice %119 {offsets = [0, 64], sizes = [8, 32], strides = [1, 1]} : vector<8x96xf32> to vector<8x32xf32>
    %125 = arith.mulf %123, %107 : vector<8x32xf32>
    %126 = arith.mulf %122, %121 : vector<8x32xf32>
    %127 = arith.addf %125, %126 : vector<8x32xf32>
    %128 = math.tanh %127 : vector<8x32xf32>
    %129 = arith.mulf %124, %128 : vector<8x32xf32>
    %130 = arith.addi %12, %c3_i32 : i32
    %131 = vector.broadcast %130 : i32 to vector<8x1xi32>
    %132 = arith.cmpi slt, %131, %11 : vector<8x1xi32>
    %133 = vector.shape_cast %132 : vector<8x1xi1> to vector<8x1xi1>
    %134 = vector.broadcast %133 : vector<8x1xi1> to vector<8x32xi1>
    %135 = arith.select %134, %129, %104 : vector<8x32xi1>, vector<8x32xf32>
    %136 = vector.shape_cast %132 : vector<8x1xi1> to vector<8x1xi1>
    %137 = vector.broadcast %136 : vector<8x1xi1> to vector<8x32xi1>
    %138 = arith.select %137, %127, %107 : vector<8x32xi1>, vector<8x32xf32>
    %c4_i32 = arith.constant 4 : i32
    %c8_i32_33 = arith.constant 8 : i32
    %139 = arith.muli %c4_i32, %c8_i32_33 : i32
    %140 = tpu.assume_multiple %139, 8 : i32
    %141 = arith.index_cast %140 : i32 to index
    %c0_34 = arith.constant 0 : index
    %142 = vector.load %arg11[%141, %c0_34] : memref<64x128xf32, #tpu.memory_space<vmem>>, vector<8x128xf32>
    %cst_35 = arith.constant dense<0.000000e+00> : vector<8x128xf32>
    %143 = tpu.matmul %135, %10, %cst_35 {dimension_numbers = #tpu.dot_dimension_numbers<[1], [0], [0], [1], [0, 0, 1, 1], [], []>} : vector<8x32xf32>, vector<32x128xf32>, vector<8x128xf32> -> vector<8x128xf32>
    %144 = arith.addf %142, %143 : vector<8x128xf32>
    %145 = vector.extract_strided_slice %144 {offsets = [0, 0], sizes = [8, 96], strides = [1, 1]} : vector<8x128xf32> to vector<8x96xf32>
    %146 = arith.negf %145 : vector<8x96xf32>
    %147 = math.exp %146 : vector<8x96xf32>
    %cst_36 = arith.constant 1.000000e+00 : f32
    %148 = vector.broadcast %cst_36 : f32 to vector<8x96xf32>
    %149 = arith.addf %148, %147 : vector<8x96xf32>
    %150 = arith.divf %148, %149 : vector<8x96xf32>
    %151 = vector.extract_strided_slice %144 {offsets = [0, 96], sizes = [8, 32], strides = [1, 1]} : vector<8x128xf32> to vector<8x32xf32>
    %152 = math.tanh %151 : vector<8x32xf32>
    %153 = vector.extract_strided_slice %150 {offsets = [0, 0], sizes = [8, 32], strides = [1, 1]} : vector<8x96xf32> to vector<8x32xf32>
    %154 = vector.extract_strided_slice %150 {offsets = [0, 32], sizes = [8, 32], strides = [1, 1]} : vector<8x96xf32> to vector<8x32xf32>
    %155 = vector.extract_strided_slice %150 {offsets = [0, 64], sizes = [8, 32], strides = [1, 1]} : vector<8x96xf32> to vector<8x32xf32>
    %156 = arith.mulf %154, %138 : vector<8x32xf32>
    %157 = arith.mulf %153, %152 : vector<8x32xf32>
    %158 = arith.addf %156, %157 : vector<8x32xf32>
    %159 = math.tanh %158 : vector<8x32xf32>
    %160 = arith.mulf %155, %159 : vector<8x32xf32>
    %161 = arith.addi %12, %c4_i32 : i32
    %162 = vector.broadcast %161 : i32 to vector<8x1xi32>
    %163 = arith.cmpi slt, %162, %11 : vector<8x1xi32>
    %164 = vector.shape_cast %163 : vector<8x1xi1> to vector<8x1xi1>
    %165 = vector.broadcast %164 : vector<8x1xi1> to vector<8x32xi1>
    %166 = arith.select %165, %160, %135 : vector<8x32xi1>, vector<8x32xf32>
    %167 = vector.shape_cast %163 : vector<8x1xi1> to vector<8x1xi1>
    %168 = vector.broadcast %167 : vector<8x1xi1> to vector<8x32xi1>
    %169 = arith.select %168, %158, %138 : vector<8x32xi1>, vector<8x32xf32>
    %c5_i32 = arith.constant 5 : i32
    %c8_i32_37 = arith.constant 8 : i32
    %170 = arith.muli %c5_i32, %c8_i32_37 : i32
    %171 = tpu.assume_multiple %170, 8 : i32
    %172 = arith.index_cast %171 : i32 to index
    %c0_38 = arith.constant 0 : index
    %173 = vector.load %arg11[%172, %c0_38] : memref<64x128xf32, #tpu.memory_space<vmem>>, vector<8x128xf32>
    %cst_39 = arith.constant dense<0.000000e+00> : vector<8x128xf32>
    %174 = tpu.matmul %166, %10, %cst_39 {dimension_numbers = #tpu.dot_dimension_numbers<[1], [0], [0], [1], [0, 0, 1, 1], [], []>} : vector<8x32xf32>, vector<32x128xf32>, vector<8x128xf32> -> vector<8x128xf32>
    %175 = arith.addf %173, %174 : vector<8x128xf32>
    %176 = vector.extract_strided_slice %175 {offsets = [0, 0], sizes = [8, 96], strides = [1, 1]} : vector<8x128xf32> to vector<8x96xf32>
    %177 = arith.negf %176 : vector<8x96xf32>
    %178 = math.exp %177 : vector<8x96xf32>
    %cst_40 = arith.constant 1.000000e+00 : f32
    %179 = vector.broadcast %cst_40 : f32 to vector<8x96xf32>
    %180 = arith.addf %179, %178 : vector<8x96xf32>
    %181 = arith.divf %179, %180 : vector<8x96xf32>
    %182 = vector.extract_strided_slice %175 {offsets = [0, 96], sizes = [8, 32], strides = [1, 1]} : vector<8x128xf32> to vector<8x32xf32>
    %183 = math.tanh %182 : vector<8x32xf32>
    %184 = vector.extract_strided_slice %181 {offsets = [0, 0], sizes = [8, 32], strides = [1, 1]} : vector<8x96xf32> to vector<8x32xf32>
    %185 = vector.extract_strided_slice %181 {offsets = [0, 32], sizes = [8, 32], strides = [1, 1]} : vector<8x96xf32> to vector<8x32xf32>
    %186 = vector.extract_strided_slice %181 {offsets = [0, 64], sizes = [8, 32], strides = [1, 1]} : vector<8x96xf32> to vector<8x32xf32>
    %187 = arith.mulf %185, %169 : vector<8x32xf32>
    %188 = arith.mulf %184, %183 : vector<8x32xf32>
    %189 = arith.addf %187, %188 : vector<8x32xf32>
    %190 = math.tanh %189 : vector<8x32xf32>
    %191 = arith.mulf %186, %190 : vector<8x32xf32>
    %192 = arith.addi %12, %c5_i32 : i32
    %193 = vector.broadcast %192 : i32 to vector<8x1xi32>
    %194 = arith.cmpi slt, %193, %11 : vector<8x1xi32>
    %195 = vector.shape_cast %194 : vector<8x1xi1> to vector<8x1xi1>
    %196 = vector.broadcast %195 : vector<8x1xi1> to vector<8x32xi1>
    %197 = arith.select %196, %191, %166 : vector<8x32xi1>, vector<8x32xf32>
    %198 = vector.shape_cast %194 : vector<8x1xi1> to vector<8x1xi1>
    %199 = vector.broadcast %198 : vector<8x1xi1> to vector<8x32xi1>
    %200 = arith.select %199, %189, %169 : vector<8x32xi1>, vector<8x32xf32>
    %c6_i32 = arith.constant 6 : i32
    %c8_i32_41 = arith.constant 8 : i32
    %201 = arith.muli %c6_i32, %c8_i32_41 : i32
    %202 = tpu.assume_multiple %201, 8 : i32
    %203 = arith.index_cast %202 : i32 to index
    %c0_42 = arith.constant 0 : index
    %204 = vector.load %arg11[%203, %c0_42] : memref<64x128xf32, #tpu.memory_space<vmem>>, vector<8x128xf32>
    %cst_43 = arith.constant dense<0.000000e+00> : vector<8x128xf32>
    %205 = tpu.matmul %197, %10, %cst_43 {dimension_numbers = #tpu.dot_dimension_numbers<[1], [0], [0], [1], [0, 0, 1, 1], [], []>} : vector<8x32xf32>, vector<32x128xf32>, vector<8x128xf32> -> vector<8x128xf32>
    %206 = arith.addf %204, %205 : vector<8x128xf32>
    %207 = vector.extract_strided_slice %206 {offsets = [0, 0], sizes = [8, 96], strides = [1, 1]} : vector<8x128xf32> to vector<8x96xf32>
    %208 = arith.negf %207 : vector<8x96xf32>
    %209 = math.exp %208 : vector<8x96xf32>
    %cst_44 = arith.constant 1.000000e+00 : f32
    %210 = vector.broadcast %cst_44 : f32 to vector<8x96xf32>
    %211 = arith.addf %210, %209 : vector<8x96xf32>
    %212 = arith.divf %210, %211 : vector<8x96xf32>
    %213 = vector.extract_strided_slice %206 {offsets = [0, 96], sizes = [8, 32], strides = [1, 1]} : vector<8x128xf32> to vector<8x32xf32>
    %214 = math.tanh %213 : vector<8x32xf32>
    %215 = vector.extract_strided_slice %212 {offsets = [0, 0], sizes = [8, 32], strides = [1, 1]} : vector<8x96xf32> to vector<8x32xf32>
    %216 = vector.extract_strided_slice %212 {offsets = [0, 32], sizes = [8, 32], strides = [1, 1]} : vector<8x96xf32> to vector<8x32xf32>
    %217 = vector.extract_strided_slice %212 {offsets = [0, 64], sizes = [8, 32], strides = [1, 1]} : vector<8x96xf32> to vector<8x32xf32>
    %218 = arith.mulf %216, %200 : vector<8x32xf32>
    %219 = arith.mulf %215, %214 : vector<8x32xf32>
    %220 = arith.addf %218, %219 : vector<8x32xf32>
    %221 = math.tanh %220 : vector<8x32xf32>
    %222 = arith.mulf %217, %221 : vector<8x32xf32>
    %223 = arith.addi %12, %c6_i32 : i32
    %224 = vector.broadcast %223 : i32 to vector<8x1xi32>
    %225 = arith.cmpi slt, %224, %11 : vector<8x1xi32>
    %226 = vector.shape_cast %225 : vector<8x1xi1> to vector<8x1xi1>
    %227 = vector.broadcast %226 : vector<8x1xi1> to vector<8x32xi1>
    %228 = arith.select %227, %222, %197 : vector<8x32xi1>, vector<8x32xf32>
    %229 = vector.shape_cast %225 : vector<8x1xi1> to vector<8x1xi1>
    %230 = vector.broadcast %229 : vector<8x1xi1> to vector<8x32xi1>
    %231 = arith.select %230, %220, %200 : vector<8x32xi1>, vector<8x32xf32>
    %c7_i32 = arith.constant 7 : i32
    %c8_i32_45 = arith.constant 8 : i32
    %232 = arith.muli %c7_i32, %c8_i32_45 : i32
    %233 = tpu.assume_multiple %232, 8 : i32
    %234 = arith.index_cast %233 : i32 to index
    %c0_46 = arith.constant 0 : index
    %235 = vector.load %arg11[%234, %c0_46] : memref<64x128xf32, #tpu.memory_space<vmem>>, vector<8x128xf32>
    %cst_47 = arith.constant dense<0.000000e+00> : vector<8x128xf32>
    %236 = tpu.matmul %228, %10, %cst_47 {dimension_numbers = #tpu.dot_dimension_numbers<[1], [0], [0], [1], [0, 0, 1, 1], [], []>} : vector<8x32xf32>, vector<32x128xf32>, vector<8x128xf32> -> vector<8x128xf32>
    %237 = arith.addf %235, %236 : vector<8x128xf32>
    %238 = vector.extract_strided_slice %237 {offsets = [0, 0], sizes = [8, 96], strides = [1, 1]} : vector<8x128xf32> to vector<8x96xf32>
    %239 = arith.negf %238 : vector<8x96xf32>
    %240 = math.exp %239 : vector<8x96xf32>
    %cst_48 = arith.constant 1.000000e+00 : f32
    %241 = vector.broadcast %cst_48 : f32 to vector<8x96xf32>
    %242 = arith.addf %241, %240 : vector<8x96xf32>
    %243 = arith.divf %241, %242 : vector<8x96xf32>
    %244 = vector.extract_strided_slice %237 {offsets = [0, 96], sizes = [8, 32], strides = [1, 1]} : vector<8x128xf32> to vector<8x32xf32>
    %245 = math.tanh %244 : vector<8x32xf32>
    %246 = vector.extract_strided_slice %243 {offsets = [0, 0], sizes = [8, 32], strides = [1, 1]} : vector<8x96xf32> to vector<8x32xf32>
    %247 = vector.extract_strided_slice %243 {offsets = [0, 32], sizes = [8, 32], strides = [1, 1]} : vector<8x96xf32> to vector<8x32xf32>
    %248 = vector.extract_strided_slice %243 {offsets = [0, 64], sizes = [8, 32], strides = [1, 1]} : vector<8x96xf32> to vector<8x32xf32>
    %249 = arith.mulf %247, %231 : vector<8x32xf32>
    %250 = arith.mulf %246, %245 : vector<8x32xf32>
    %251 = arith.addf %249, %250 : vector<8x32xf32>
    %252 = math.tanh %251 : vector<8x32xf32>
    %253 = arith.mulf %248, %252 : vector<8x32xf32>
    %254 = arith.addi %12, %c7_i32 : i32
    %255 = vector.broadcast %254 : i32 to vector<8x1xi32>
    %256 = arith.cmpi slt, %255, %11 : vector<8x1xi32>
    %257 = vector.shape_cast %256 : vector<8x1xi1> to vector<8x1xi1>
    %258 = vector.broadcast %257 : vector<8x1xi1> to vector<8x32xi1>
    %259 = arith.select %258, %253, %228 : vector<8x32xi1>, vector<8x32xf32>
    %260 = vector.shape_cast %256 : vector<8x1xi1> to vector<8x1xi1>
    %261 = vector.broadcast %260 : vector<8x1xi1> to vector<8x32xi1>
    %262 = arith.select %261, %251, %231 : vector<8x32xi1>, vector<8x32xf32>
    %c8_i32_49 = arith.constant 8 : i32
    %c0_50 = arith.constant 0 : index
    %c0_51 = arith.constant 0 : index
    %263 = vector.load %arg9[%c0_50, %c0_51] : memref<8x32xf32, #tpu.memory_space<vmem>>, vector<8x32xf32>
    tpu.vector_store %arg9[%c0_50, %c0_51], %259 {strides = array<i32>} : memref<8x32xf32, #tpu.memory_space<vmem>>, vector<8x32xf32>,
    %c0_52 = arith.constant 0 : index
    %c0_53 = arith.constant 0 : index
    %264 = vector.load %arg10[%c0_52, %c0_53] : memref<8x32xf32, #tpu.memory_space<vmem>>, vector<8x32xf32>
    tpu.vector_store %arg10[%c0_52, %c0_53], %262 {strides = array<i32>} : memref<8x32xf32, #tpu.memory_space<vmem>>, vector<8x32xf32>,
    %c1_i32_54 = arith.constant 1 : i32
    %265 = arith.cmpi eq, %arg0, %c1_i32_54 : i32
    %266 = arith.extui %265 : i1 to i32
    %c0_i32_55 = arith.constant 0 : i32
    %267 = arith.cmpi ne, %266, %c0_i32_55 : i32
    scf.if %267 {
      %c0_56 = arith.constant 0 : index
      %c0_57 = arith.constant 0 : index
      %268 = vector.load %arg6[%c0_56, %c0_57] : memref<32x128xf32, #tpu.memory_space<vmem>>, vector<32x128xf32>
      %cst_58 = arith.constant dense<0.000000e+00> : vector<8x128xf32>
      %269 = tpu.matmul %259, %268, %cst_58 {dimension_numbers = #tpu.dot_dimension_numbers<[1], [0], [0], [1], [0, 0, 1, 1], [], []>} : vector<8x32xf32>, vector<32x128xf32>, vector<8x128xf32> -> vector<8x128xf32>
      %c0_59 = arith.constant 0 : index
      %c0_60 = arith.constant 0 : index
      %270 = vector.load %arg7[%c0_59, %c0_60] : memref<1x128xf32, #tpu.memory_space<vmem>>, vector<1x128xf32>
      %271 = vector.broadcast %270 : vector<1x128xf32> to vector<8x128xf32>
      %272 = arith.addf %269, %271 : vector<8x128xf32>
      %cst_61 = arith.constant 0.000000e+00 : f32
      %273 = vector.broadcast %cst_61 : f32 to vector<8x128xf32>
      %274 = arith.maximumf %272, %273 : vector<8x128xf32>
      %275 = tpu.iota {dimensions = array<i32: 1>} : vector<8x128xi32>
      %c6_i32_62 = arith.constant 6 : i32
      %276 = vector.broadcast %c6_i32_62 : i32 to vector<8x128xi32>
      %277 = arith.cmpi slt, %275, %276 : vector<8x128xi32>
      %cst_63 = arith.constant -1.000000e+30 : f32
      %278 = vector.broadcast %cst_63 : f32 to vector<8x128xf32>
      %279 = arith.select %277, %274, %278 : vector<8x128xi1>, vector<8x128xf32>
      %cst_64 = arith.constant dense<0xFF800000> : vector<8xf32>
      %280 = vector.multi_reduction <maximumf>, %279, %cst_64 [1] : vector<8x128xf32> to vector<8xf32>
      %281 = vector.shape_cast %280 : vector<8xf32> to vector<8x1xf32>
      %282 = vector.broadcast %281 : vector<8x1xf32> to vector<8x128xf32>
      %283 = arith.subf %279, %282 : vector<8x128xf32>
      %284 = math.exp %283 : vector<8x128xf32>
      %cst_65 = arith.constant dense<0.000000e+00> : vector<8xf32>
      %285 = vector.multi_reduction <add>, %284, %cst_65 [1] : vector<8x128xf32> to vector<8xf32>
      %286 = vector.shape_cast %285 : vector<8xf32> to vector<8x1xf32>
      %287 = math.log %286 : vector<8x1xf32>
      %288 = vector.broadcast %287 : vector<8x1xf32> to vector<8x128xf32>
      %289 = arith.subf %283, %288 : vector<8x128xf32>
      %c0_66 = arith.constant 0 : index
      %c0_67 = arith.constant 0 : index
      %290 = vector.load %arg8[%c0_66, %c0_67] : memref<8x128xf32, #tpu.memory_space<vmem>>, vector<8x128xf32>
      tpu.vector_store %arg8[%c0_66, %c0_67], %289 {strides = array<i32>} : memref<8x128xf32, #tpu.memory_space<vmem>>, vector<8x128xf32>,
    } else {
    }
    return
  }
  func.func @transform_0(%arg0: i32) -> (i32, i32) {
    %c0_i32 = arith.constant 0 : i32
    %c0_i32_0 = arith.constant 0 : i32
    %c0_i32_1 = arith.constant 0 : i32
    return %c0_i32, %c0_i32_0 : i32, i32
  }
  func.func @transform_1(%arg0: i32) -> (i32, i32) {
    %c0_i32 = arith.constant 0 : i32
    %c0_i32_0 = arith.constant 0 : i32
    return %arg0, %c0_i32 : i32, i32
  }
  func.func @transform_2(%arg0: i32) -> (i32, i32) {
    %c0_i32 = arith.constant 0 : i32
    %c0_i32_0 = arith.constant 0 : i32
    %c0_i32_1 = arith.constant 0 : i32
    return %c0_i32, %c0_i32_0 : i32, i32
  }
  func.func @transform_3(%arg0: i32) -> (i32, i32) {
    %c0_i32 = arith.constant 0 : i32
    %c0_i32_0 = arith.constant 0 : i32
    %c0_i32_1 = arith.constant 0 : i32
    return %c0_i32, %c0_i32_0 : i32, i32
  }
  func.func @transform_4(%arg0: i32) -> (i32, i32) {
    %c0_i32 = arith.constant 0 : i32
    %c0_i32_0 = arith.constant 0 : i32
    %c0_i32_1 = arith.constant 0 : i32
    return %c0_i32, %c0_i32_0 : i32, i32
  }
  func.func @transform_5(%arg0: i32) -> (i32, i32) {
    %c0_i32 = arith.constant 0 : i32
    %c0_i32_0 = arith.constant 0 : i32
    %c0_i32_1 = arith.constant 0 : i32
    return %c0_i32, %c0_i32_0 : i32, i32
  }
  func.func @transform_6(%arg0: i32) -> (i32, i32) {
    %c0_i32 = arith.constant 0 : i32
    %c0_i32_0 = arith.constant 0 : i32
    %c0_i32_1 = arith.constant 0 : i32
    return %c0_i32, %c0_i32_0 : i32, i32
  }
  func.func @transform_7(%arg0: i32) -> (i32, i32) {
    %c0_i32 = arith.constant 0 : i32
    %c0_i32_0 = arith.constant 0 : i32
    %c0_i32_1 = arith.constant 0 : i32
    return %c0_i32, %c0_i32_0 : i32, i32
  }
}

</mosaic_0001>

<llo_original>
// kernel: tpu_custom_call.1
$region0: #{tpu_custom_call.1}
  #allocation0 [shape = 'u32[]', space=smem, size = 0x4, offset = 0x4, fixed_abs, tag = 'smem constant byte address 0x4 - core index']
  #allocation1 [shape = 'u32[144,128]{1,0:T(1,128)}', space=vmem, size = 0x12000, scoped, tag = 'internal scratch']
  #allocation2 [shape = 'f32[8,32]{1,0:T(8,128)}', space=vmem, size = 0x1000, scoped, tag = 'scratch operand']
  #allocation3 [shape = 'f32[8,32]{1,0:T(8,128)}', space=vmem, size = 0x1000, scoped, tag = 'scratch operand']
  #allocation4 [shape = 'f32[64,128]{1,0:T(8,128)}', space=vmem, size = 0x8000, scoped, tag = 'scratch operand']
  %s0 = inlined_call_operand.vmem [shape: s32[8,1], index: 0, kind: input, shape index: {}]
  %s1 = inlined_call_operand.vmem [shape: f32[128,8], index: 1, kind: input, shape index: {}]
  %s2 = inlined_call_operand.vmem [shape: f32[8,128], index: 2, kind: input, shape index: {}]
  %s3 = inlined_call_operand.vmem [shape: f32[32,128], index: 3, kind: input, shape index: {}]
  %s4 = inlined_call_operand.vmem [shape: f32[1,128], index: 4, kind: input, shape index: {}]
  %s5 = inlined_call_operand.vmem [shape: f32[32,128], index: 5, kind: input, shape index: {}]
  %s6 = inlined_call_operand.vmem [shape: f32[1,128], index: 6, kind: input, shape index: {}]
  %s7 = inlined_call_operand.hbm [shape: f32[8,128], index: 7, kind: output, shape index: {}]
  %s8 = sld [smem:[#allocation0]]
  $region69: #{tpu_custom_call.1} parent=0
    _
  %s10 = ssub.s32 1, %s8
  %s11 = scalar_select 0, %s10, %s8
  $region1: #{tpu_custom_call.1} parent=0
    #allocation5 [shape = 'u8[4096]{0}', space=vmem, size = 0x1000, scoped, tag = 'output window, operand 0, single buffered']
    #allocation6 [shape = 's32[2]{0}', space=sflag, size = 0x8, scoped, tag = 'scoped memory for tpu_custom_call.1']
    %12 = vsyncpa [#allocation6], 0
    loop: start=0, step=1, limit=4
    $region2: #{tpu_custom_call.1} parent=1 // loop_pre_header
      _
    $region3: #{tpu_custom_call.1} parent=1 // loop_header
      %s14 = sphi 0, %s18
      %p15 = scmp.ge.s32.totalorder %s14, 4
      %s22 = sphi 0, %s22
      %s24 = sphi 0, %s22
      %s25 = sphi 0, %s24
      %s39 = sphi 0, %s25
      %s45 = sphi 0, %s47
      %s48 = sphi 0, %s45
      %s49 = sphi 0, %s48
      %s65 = sphi 0, %s49
      %s69 = sphi 0, %s69
      %s71 = sphi 0, %s69
      %s72 = sphi 0, %s71
      %s86 = sphi 0, %s72
      %s90 = sphi 0, %s90
      %s92 = sphi 0, %s90
      %s93 = sphi 0, %s92
      %s107 = sphi 0, %s93
      %s111 = sphi 0, %s111
      %s113 = sphi 0, %s111
      %s114 = sphi 0, %s113
      %s128 = sphi 0, %s114
      %s132 = sphi 0, %s132
      %s134 = sphi 0, %s132
      %s135 = sphi 0, %s134
      %s149 = sphi 0, %s135
      %s153 = sphi 0, %s153
      %s155 = sphi 0, %s153
      %s156 = sphi 0, %s155
      %s170 = sphi 0, %s156
      %s174 = sphi 0, %s174
      %s176 = sphi 0, %s174
      %s177 = sphi 0, %s176
      %s191 = sphi 0, %s177
    $region4: #{tpu_custom_call.1} parent=1 // loop_header_branch
      %17 = sbr.rel (%p15) target = $region8
    $region5: #{tpu_custom_call.1} parent=1 // loop_body
      %s19 = ssub.s32 %s14, 1
      %s20 = ssub.s32 %s14, 2
      %s21 = sadd.s32 %s14, 1
      %s23 = sadd.s32 %s22, 1
      %p26 = scmp.eq.s32.totalorder %s14, 1
      %p27 = scmp.ne.s32.totalorder %s22, %s24
      %p28 = scmp.eq.s32.totalorder %s14, 0
      %p29 = por %p27, %p28
      %p30 = scmp.ne.s32.totalorder %s22, %s24
      %p31 = scmp.eq.s32.totalorder %s19, 1
      %p32 = por %p30, %p31
      %p33 = scmp.ne.s32.totalorder %s24, %s25
      %p34 = scmp.eq.s32.totalorder %s19, 0
      %p35 = por %p33, %p34
      %p36 = scmp.ne.s32.totalorder %s24, %s25
      %p37 = scmp.eq.s32.totalorder %s20, 1
      %p38 = por %p36, %p37
      %p40 = scmp.ne.s32.totalorder %s25, %s39
      %p41 = scmp.eq.s32.totalorder %s20, 0
      %p42 = por %p40, %p41
      %s43 = ssub.s32 %s14, %s21
      %p44 = scmp.eq.s32.totalorder %s43, 0
      %s46 = sadd.s32 %s45, 1
      %s47 = scalar_select %p44, %s45, %s46
      %p50 = pneg %p44
      %p51 = scmp.eq.s32.totalorder %s14, 1
      %p52 = por %p50, %p51
      %p53 = scmp.ne.s32.totalorder %s45, %s48
      %p54 = scmp.eq.s32.totalorder %s14, 0
      %p55 = por %p53, %p54
      %p56 = scmp.ne.s32.totalorder %s45, %s48
      %p57 = scmp.eq.s32.totalorder %s19, 1
      %p58 = por %p56, %p57
      %p59 = scmp.ne.s32.totalorder %s48, %s49
      %p60 = scmp.eq.s32.totalorder %s19, 0
      %p61 = por %p59, %p60
      %p62 = scmp.ne.s32.totalorder %s48, %s49
      %p63 = scmp.eq.s32.totalorder %s20, 1
      %p64 = por %p62, %p63
      %p66 = scmp.ne.s32.totalorder %s49, %s65
      %p67 = scmp.eq.s32.totalorder %s20, 0
      %p68 = por %p66, %p67
      %s70 = sadd.s32 %s69, 1
      %p73 = scmp.eq.s32.totalorder %s14, 1
      %p74 = scmp.ne.s32.totalorder %s69, %s71
      %p75 = scmp.eq.s32.totalorder %s14, 0
      %p76 = por %p74, %p75
      %p77 = scmp.ne.s32.totalorder %s69, %s71
      %p78 = scmp.eq.s32.totalorder %s19, 1
      %p79 = por %p77, %p78
      %p80 = scmp.ne.s32.totalorder %s71, %s72
      %p81 = scmp.eq.s32.totalorder %s19, 0
      %p82 = por %p80, %p81
      %p83 = scmp.ne.s32.totalorder %s71, %s72
      %p84 = scmp.eq.s32.totalorder %s20, 1
      %p85 = por %p83, %p84
      %p87 = scmp.ne.s32.totalorder %s72, %s86
      %p88 = scmp.eq.s32.totalorder %s20, 0
      %p89 = por %p87, %p88
      %s91 = sadd.s32 %s90, 1
      %p94 = scmp.eq.s32.totalorder %s14, 1
      %p95 = scmp.ne.s32.totalorder %s90, %s92
      %p96 = scmp.eq.s32.totalorder %s14, 0
      %p97 = por %p95, %p96
      %p98 = scmp.ne.s32.totalorder %s90, %s92
      %p99 = scmp.eq.s32.totalorder %s19, 1
      %p100 = por %p98, %p99
      %p101 = scmp.ne.s32.totalorder %s92, %s93
      %p102 = scmp.eq.s32.totalorder %s19, 0
      %p103 = por %p101, %p102
      %p104 = scmp.ne.s32.totalorder %s92, %s93
      %p105 = scmp.eq.s32.totalorder %s20, 1
      %p106 = por %p104, %p105
      %p108 = scmp.ne.s32.totalorder %s93, %s107
      %p109 = scmp.eq.s32.totalorder %s20, 0
      %p110 = por %p108, %p109
      %s112 = sadd.s32 %s111, 1
      %p115 = scmp.eq.s32.totalorder %s14, 1
      %p116 = scmp.ne.s32.totalorder %s111, %s113
      %p117 = scmp.eq.s32.totalorder %s14, 0
      %p118 = por %p116, %p117
      %p119 = scmp.ne.s32.totalorder %s111, %s113
      %p120 = scmp.eq.s32.totalorder %s19, 1
      %p121 = por %p119, %p120
      %p122 = scmp.ne.s32.totalorder %s113, %s114
      %p123 = scmp.eq.s32.totalorder %s19, 0
      %p124 = por %p122, %p123
      %p125 = scmp.ne.s32.totalorder %s113, %s114
      %p126 = scmp.eq.s32.totalorder %s20, 1
      %p127 = por %p125, %p126
      %p129 = scmp.ne.s32.totalorder %s114, %s128
      %p130 = scmp.eq.s32.totalorder %s20, 0
      %p131 = por %p129, %p130
      %s133 = sadd.s32 %s132, 1
      %p136 = scmp.eq.s32.totalorder %s14, 1
      %p137 = scmp.ne.s32.totalorder %s132, %s134
      %p138 = scmp.eq.s32.totalorder %s14, 0
      %p139 = por %p137, %p138
      %p140 = scmp.ne.s32.totalorder %s132, %s134
      %p141 = scmp.eq.s32.totalorder %s19, 1
      %p142 = por %p140, %p141
      %p143 = scmp.ne.s32.totalorder %s134, %s135
      %p144 = scmp.eq.s32.totalorder %s19, 0
      %p145 = por %p143, %p144
      %p146 = scmp.ne.s32.totalorder %s134, %s135
      %p147 = scmp.eq.s32.totalorder %s20, 1
      %p148 = por %p146, %p147
      %p150 = scmp.ne.s32.totalorder %s135, %s149
      %p151 = scmp.eq.s32.totalorder %s20, 0
      %p152 = por %p150, %p151
      %s154 = sadd.s32 %s153, 1
      %p157 = scmp.eq.s32.totalorder %s14, 1
      %p158 = scmp.ne.s32.totalorder %s153, %s155
      %p159 = scmp.eq.s32.totalorder %s14, 0
      %p160 = por %p158, %p159
      %p161 = scmp.ne.s32.totalorder %s153, %s155
      %p162 = scmp.eq.s32.totalorder %s19, 1
      %p163 = por %p161, %p162
      %p164 = scmp.ne.s32.totalorder %s155, %s156
      %p165 = scmp.eq.s32.totalorder %s19, 0
      %p166 = por %p164, %p165
      %p167 = scmp.ne.s32.totalorder %s155, %s156
      %p168 = scmp.eq.s32.totalorder %s20, 1
      %p169 = por %p167, %p168
      %p171 = scmp.ne.s32.totalorder %s156, %s170
      %p172 = scmp.eq.s32.totalorder %s20, 0
      %p173 = por %p171, %p172
      %s175 = sadd.s32 %s174, 1
      %p178 = scmp.eq.s32.totalorder %s14, 1
      %p179 = scmp.ne.s32.totalorder %s174, %s176
      %p180 = scmp.eq.s32.totalorder %s14, 0
      %p181 = por %p179, %p180
      %p182 = scmp.ne.s32.totalorder %s174, %s176
      %p183 = scmp.eq.s32.totalorder %s19, 1
      %p184 = por %p182, %p183
      %p185 = scmp.ne.s32.totalorder %s176, %s177
      %p186 = scmp.eq.s32.totalorder %s19, 0
      %p187 = por %p185, %p186
      %p188 = scmp.ne.s32.totalorder %s176, %s177
      %p189 = scmp.eq.s32.totalorder %s20, 1
      %p190 = por %p188, %p189
      %p192 = scmp.ne.s32.totalorder %s177, %s191
      %p193 = scmp.eq.s32.totalorder %s20, 0
      %p194 = por %p192, %p193
      %p195 = scmp.le.s32.totalorder 1, %s14
      %p196 = scmp.lt.s32.totalorder %s14, 3
      %p197 = pnand %p195, %p196
      %p198 = pneg %p197
      // Predicated region
      $region9: #{tpu_custom_call.1} parent=5 // pred_check
        _
      $region10: #{tpu_custom_call.1} parent=5 // pred_check_branch
        %200 = sbr.rel (%p197) target = $region12
      $region11: #{tpu_custom_call.1} parent=5 // pred_region
        %s201 = ssub.s32 %s14, 1
        // Predicated region
        $region13: #{tpu_custom_call.1} parent=11 // pred_check
          %p202 = pneg %p35
        $region14: #{tpu_custom_call.1} parent=11 // pred_check_branch
          %204 = sbr.rel (%p202) target = $region16
        $region15: #{tpu_custom_call.1} parent=11 // pred_region
          _
        $region16: #{tpu_custom_call.1} parent=11 // pred_fallthru
          _
        // Predicated region
        $region17: #{tpu_custom_call.1} parent=11 // pred_check
          %p205 = pneg %p82
        $region18: #{tpu_custom_call.1} parent=11 // pred_check_branch
          %207 = sbr.rel (%p205) target = $region20
        $region19: #{tpu_custom_call.1} parent=11 // pred_region
          _
        $region20: #{tpu_custom_call.1} parent=11 // pred_fallthru
          _
        // Predicated region
        $region21: #{tpu_custom_call.1} parent=11 // pred_check
          %p208 = pneg %p103
        $region22: #{tpu_custom_call.1} parent=11 // pred_check_branch
          %210 = sbr.rel (%p208) target = $region24
        $region23: #{tpu_custom_call.1} parent=11 // pred_region
          _
        $region24: #{tpu_custom_call.1} parent=11 // pred_fallthru
          _
        // Predicated region
        $region25: #{tpu_custom_call.1} parent=11 // pred_check
          %p211 = pneg %p124
        $region26: #{tpu_custom_call.1} parent=11 // pred_check_branch
          %213 = sbr.rel (%p211) target = $region28
        $region27: #{tpu_custom_call.1} parent=11 // pred_region
          _
        $region28: #{tpu_custom_call.1} parent=11 // pred_fallthru
          _
        // Predicated region
        $region29: #{tpu_custom_call.1} parent=11 // pred_check
          %p214 = pneg %p145
        $region30: #{tpu_custom_call.1} parent=11 // pred_check_branch
          %216 = sbr.rel (%p214) target = $region32
        $region31: #{tpu_custom_call.1} parent=11 // pred_region
          _
        $region32: #{tpu_custom_call.1} parent=11 // pred_fallthru
          _
        // Predicated region
        $region33: #{tpu_custom_call.1} parent=11 // pred_check
          %p217 = pneg %p166
        $region34: #{tpu_custom_call.1} parent=11 // pred_check_branch
          %219 = sbr.rel (%p217) target = $region36
        $region35: #{tpu_custom_call.1} parent=11 // pred_region
          _
        $region36: #{tpu_custom_call.1} parent=11 // pred_fallthru
          _
      $region12: #{tpu_custom_call.1} parent=5 // pred_fallthru
        _
      %p220 = scmp.lt.s32.totalorder %s14, 2
      // Predicated region
      $region37: #{tpu_custom_call.1} parent=5 // pred_check
        %p221 = pneg %p220
      $region38: #{tpu_custom_call.1} parent=5 // pred_check_branch
        %223 = sbr.rel (%p221) target = $region40
      $region39: #{tpu_custom_call.1} parent=5 // pred_region
        // Predicated region
        $region41: #{tpu_custom_call.1} parent=39 // pred_check
          %p224 = pneg %p55
        $region42: #{tpu_custom_call.1} parent=39 // pred_check_branch
          %226 = sbr.rel (%p224) target = $region44
        $region43: #{tpu_custom_call.1} parent=39 // pred_region
          %s227 = smul.u32 8, %s14
          %p228 = scmp.lt.s32.totalorder %s227, 15
          %s229 = scalar_select %p228, %s227, 15
          %s230 = smul.addr %s229, 8
          %s231 = scalar_lea.vmem %s1, %s230
          %s232 = smul.u32 8, %s14
        $region44: #{tpu_custom_call.1} parent=39 // pred_fallthru
          _
      $region40: #{tpu_custom_call.1} parent=5 // pred_fallthru
        _
      %p233 = scmp.le.s32.totalorder 1, %s14
      %p234 = scmp.lt.s32.totalorder %s14, 3
      %p235 = pnand %p233, %p234
      %p236 = pneg %p235
      // Predicated region
      $region45: #{tpu_custom_call.1} parent=5 // pred_check
        _
      $region46: #{tpu_custom_call.1} parent=5 // pred_check_branch
        %238 = sbr.rel (%p235) target = $region48
      $region47: #{tpu_custom_call.1} parent=5 // pred_region
        %s239 = ssub.s32 %s14, 1
        %p240 = pneg %p35
        %p241 = pneg %p32
        %s242 = smul.u32 8, %s19
        %p243 = scmp.lt.s32.totalorder %s242, 15
        %s244 = scalar_select %p243, %s242, 15
        %s245 = smul.addr %s244, 8
        %s246 = scalar_lea.vmem %s1, %s245
        %p247 = pneg %p61
        %p248 = pneg %p58
        %p249 = pneg %p82
        %p250 = pneg %p79
        %p251 = pneg %p103
        %p252 = pneg %p100
        %p253 = pneg %p124
        %p254 = pneg %p121
        %p255 = pneg %p145
        %p256 = pneg %p142
        %p257 = pneg %p166
        %p258 = pneg %p163
        %p259 = pneg %p187
        %p260 = pneg %p184
        %s261 = smul.u32 8, %s19
        %p262 = scmp.lt.s32.totalorder %s261, 15
        %s263 = scalar_select %p262, %s261, 15
        %s264 = smul.addr %s263, 8
        %s265 = scalar_lea.vmem %s1, %s264
        %s266 = smul.u32 8, %s19
        %p267 = scmp.eq.s32.totalorder %s19, 0
        // Predicated region
        $region49: #{tpu_custom_call.1} parent=47 // pred_check
          %p268 = pneg %p267
        $region50: #{tpu_custom_call.1} parent=47 // pred_check_branch
          %270 = sbr.rel (%p268) target = $region52
        $region51: #{tpu_custom_call.1} parent=47 // pred_region
          %vm271 = vcmask 261120
          %272 = vst.msk [vmem:[#allocation2] sm:$0xff] %vm271, 0.0
          %273 = vst.msk [vmem:[#allocation3] sm:$0xff] %vm271, 0.0
        $region52: #{tpu_custom_call.1} parent=47 // pred_fallthru
          _
        %v274 = vld [vmem:[%s265] sm:$0xff]
        %v275 = vld [vmem:[%s265 + $0x8] sm:$0xff]
        %v276 = vld [vmem:[%s265 + $0x10] sm:$0xff]
        %v277 = vld [vmem:[%s265 + $0x18] sm:$0xff]
        %v278 = vld [vmem:[%s265 + $0x20] sm:$0xff]
        %v279 = vld [vmem:[%s265 + $0x28] sm:$0xff]
        %v280 = vld [vmem:[%s265 + $0x30] sm:$0xff]
        %v281 = vld [vmem:[%s265 + $0x38] sm:$0xff]
        %v282 = vld [vmem:[%s2] sm:$0xff]
        %v283 = vld [vmem:[%s4] sm:$0x1]
        %v285 = vlaneseq
        %v286 = vshrl.u32 %v285, 7
        %v287 = vsub.s32 0, %v286
        %v288 = vrot.slane %v283, %v287
        %vm290 = vcmask 64512
        %v292 = vsel %vm290, %v274, 0
        %v295 = vsel %vm290, %v275, 0
        %v298 = vsel %vm290, %v276, 0
        %v301 = vsel %vm290, %v277, 0
        %v304 = vsel %vm290, %v278, 0
        %v307 = vsel %vm290, %v279, 0
        %v310 = vsel %vm290, %v280, 0
        %v313 = vsel %vm290, %v281, 0
        %315 = vmatprep.subr.mxu0 0.0
        %316 = vmatpush1.msra.mxu0 0.0
        %317 = vmatprep.subr.mxu0 0.0
        %318 = vmatpush1.msra.mxu0 0.0
        %319 = vmatprep.subr.mxu0 0.0
        %320 = vmatpush1.msra.mxu0 0.0
        %321 = vmatprep.subr.mxu0 0.0
        %322 = vmatpush1.msra.mxu0 0.0
        %323 = vmatprep.subr.mxu0 0.0
        %324 = vmatpush1.msra.mxu0 0.0
        %325 = vmatprep.subr.mxu0 0.0
        %326 = vmatpush1.msra.mxu0 0.0
        %327 = vmatprep.subr.mxu0 0.0
        %328 = vmatpush1.msra.mxu0 0.0
        %329 = vmatprep.subr.mxu0 0.0
        %330 = vmatpush1.msra.mxu0 0.0
        %331 = vmatprep.subr.mxu0 0.0
        %332 = vmatpush1.msra.mxu0 0.0
        %333 = vmatprep.subr.mxu0 0.0
        %334 = vmatpush1.msra.mxu0 0.0
        %335 = vmatprep.subr.mxu0 0.0
        %336 = vmatpush1.msra.mxu0 0.0
        %337 = vmatprep.subr.mxu0 0.0
        %338 = vmatpush1.msra.mxu0 0.0
        %339 = vmatprep.subr.mxu0 0.0
        %340 = vmatpush1.msra.mxu0 0.0
        %341 = vmatprep.subr.mxu0 0.0
        %342 = vmatpush1.msra.mxu0 0.0
        %343 = vmatprep.subr.mxu0 0.0
        %344 = vmatpush1.msra.mxu0 0.0
        %345 = vmatprep.subr.mxu0 0.0
        %346 = vmatpush1.msra.mxu0 %v282
        %347 = vmatprep.subr.mxu0 0.0
        %348 = vmatpush2.msra.mxu0 0.0
        %349 = vmatprep.subr.mxu0 0.0
        %350 = vmatpush2.msra.mxu0 0.0
        %351 = vmatprep.subr.mxu0 0.0
        %352 = vmatpush2.msra.mxu0 0.0
        %353 = vmatprep.subr.mxu0 0.0
        %354 = vmatpush2.msra.mxu0 0.0
        %355 = vmatprep.subr.mxu0 0.0
        %356 = vmatpush2.msra.mxu0 0.0
        %357 = vmatprep.subr.mxu0 0.0
        %358 = vmatpush2.msra.mxu0 0.0
        %359 = vmatprep.subr.mxu0 0.0
        %360 = vmatpush2.msra.mxu0 0.0
        %361 = vmatprep.subr.mxu0 0.0
        %362 = vmatpush2.msra.mxu0 0.0
        %363 = vmatprep.subr.mxu0 0.0
        %364 = vmatpush2.msra.mxu0 0.0
        %365 = vmatprep.subr.mxu0 0.0
        %366 = vmatpush2.msra.mxu0 0.0
        %367 = vmatprep.subr.mxu0 0.0
        %368 = vmatpush2.msra.mxu0 0.0
        %369 = vmatprep.subr.mxu0 0.0
        %370 = vmatpush2.msra.mxu0 0.0
        %371 = vmatprep.subr.mxu0 0.0
        %372 = vmatpush2.msra.mxu0 0.0
        %373 = vmatprep.subr.mxu0 0.0
        %374 = vmatpush2.msra.mxu0 0.0
        %375 = vmatprep.subr.mxu0 0.0
        %376 = vmatpush2.msra.mxu0 0.0
        %377 = vmatprep.subr.mxu0 0.0
        %378 = vmatpush2.msra.mxu0 0.0
        %379 = vmatprep.mubr.f32.mxu0 0.0
        %380 = vmatmul.mubr.f32.gmra.mxu0 %v292
        %v381 = vpop.f32.mrf.mxu0
        %v382 = vadd.f32 %v288, %v381
        %v383 = vpop.f32.mrf.mxu0
        %384 = vmatprep.mubr.f32.mxu0 0.0
        %385 = vmatmul.mubr.f32.gmra.mxu0 %v295
        %v386 = vpop.f32.mrf.mxu0
        %v387 = vadd.f32 %v288, %v386
        %v388 = vpop.f32.mrf.mxu0
        %389 = vmatprep.mubr.f32.mxu0 0.0
        %390 = vmatmul.mubr.f32.gmra.mxu0 %v298
        %v391 = vpop.f32.mrf.mxu0
        %v392 = vadd.f32 %v288, %v391
        %v393 = vpop.f32.mrf.mxu0
        %394 = vmatprep.mubr.f32.mxu0 0.0
        %395 = vmatmul.mubr.f32.gmra.mxu0 %v301
        %v396 = vpop.f32.mrf.mxu0
        %v397 = vadd.f32 %v288, %v396
        %v398 = vpop.f32.mrf.mxu0
        %399 = vmatprep.mubr.f32.mxu0 0.0
        %400 = vmatmul.mubr.f32.gmra.mxu0 %v304
        %v401 = vpop.f32.mrf.mxu0
        %v402 = vadd.f32 %v288, %v401
        %v403 = vpop.f32.mrf.mxu0
        %404 = vmatprep.mubr.f32.mxu0 0.0
        %405 = vmatmul.mubr.f32.gmra.mxu0 %v307
        %v406 = vpop.f32.mrf.mxu0
        %v407 = vadd.f32 %v288, %v406
        %v408 = vpop.f32.mrf.mxu0
        %409 = vmatprep.mubr.f32.mxu0 0.0
        %410 = vmatmul.mubr.f32.gmra.mxu0 %v310
        %v411 = vpop.f32.mrf.mxu0
        %v412 = vadd.f32 %v288, %v411
        %v413 = vpop.f32.mrf.mxu0
        %414 = vmatprep.mubr.f32.mxu0 0.0
        %415 = vmatmul.mubr.f32.gmra.mxu0 %v313
        %v416 = vpop.f32.mrf.mxu0
        %v417 = vadd.f32 %v288, %v416
        %v418 = vpop.f32.mrf.mxu0
        %419 = vdwg.mxu0
        %420 = vst [vmem:[#allocation4] sm:$0xff] %v382
        %421 = vst [vmem:[#allocation4 + $0x8] sm:$0xff] %v387
        %422 = vst [vmem:[#allocation4 + $0x10] sm:$0xff] %v392
        %423 = vst [vmem:[#allocation4 + $0x18] sm:$0xff] %v397
        %424 = vst [vmem:[#allocation4 + $0x20] sm:$0xff] %v402
        %425 = vst [vmem:[#allocation4 + $0x28] sm:$0xff] %v407
        %426 = vst [vmem:[#allocation4 + $0x30] sm:$0xff] %v412
        %427 = vst [vmem:[#allocation4 + $0x38] sm:$0xff] %v417
        %v428 = vld [vmem:[%s3] sm:$0xff]
        %v429 = vld [vmem:[%s3 + $0x8] sm:$0xff]
        %v430 = vld [vmem:[%s3 + $0x10] sm:$0xff]
        %v431 = vld [vmem:[%s3 + $0x18] sm:$0xff]
        %v432 = vld [vmem:[%s0] sm:$0xff]
        %s433 = smul.u32 %s19, 8
        %v434 = vld [vmem:[#allocation2] sm:$0xff]
        %v435 = vld [vmem:[#allocation3] sm:$0xff]
        %v436 = vld [vmem:[#allocation4] sm:$0xff]
        %vm437 = vcmask 261120
        %v439 = vsel %vm437, %v434, 0
        %441 = vmatprep.subr.mxu0 0.0
        %442 = vmatpush1.msra.mxu0 0.0
        %443 = vmatprep.subr.mxu0 0.0
        %444 = vmatpush1.msra.mxu0 0.0
        %445 = vmatprep.subr.mxu0 0.0
        %446 = vmatpush1.msra.mxu0 0.0
        %447 = vmatprep.subr.mxu0 0.0
        %448 = vmatpush1.msra.mxu0 0.0
        %449 = vmatprep.subr.mxu0 0.0
        %450 = vmatpush1.msra.mxu0 0.0
        %451 = vmatprep.subr.mxu0 0.0
        %452 = vmatpush1.msra.mxu0 0.0
        %453 = vmatprep.subr.mxu0 0.0
        %454 = vmatpush1.msra.mxu0 0.0
        %455 = vmatprep.subr.mxu0 0.0
        %456 = vmatpush1.msra.mxu0 0.0
        %457 = vmatprep.subr.mxu0 0.0
        %458 = vmatpush1.msra.mxu0 0.0
        %459 = vmatprep.subr.mxu0 0.0
        %460 = vmatpush1.msra.mxu0 0.0
        %461 = vmatprep.subr.mxu0 0.0
        %462 = vmatpush1.msra.mxu0 0.0
        %463 = vmatprep.subr.mxu0 0.0
        %464 = vmatpush1.msra.mxu0 0.0
        %465 = vmatprep.subr.mxu0 0.0
        %466 = vmatpush1.msra.mxu0 %v431
        %467 = vmatprep.subr.mxu0 0.0
        %468 = vmatpush1.msra.mxu0 %v430
        %469 = vmatprep.subr.mxu0 0.0
        %470 = vmatpush1.msra.mxu0 %v429
        %471 = vmatprep.subr.mxu0 0.0
        %472 = vmatpush1.msra.mxu0 %v428
        %473 = vmatprep.subr.mxu0 0.0
        %474 = vmatpush2.msra.mxu0 0.0
        %475 = vmatprep.subr.mxu0 0.0
        %476 = vmatpush2.msra.mxu0 0.0
        %477 = vmatprep.subr.mxu0 0.0
        %478 = vmatpush2.msra.mxu0 0.0
        %479 = vmatprep.subr.mxu0 0.0
        %480 = vmatpush2.msra.mxu0 0.0
        %481 = vmatprep.subr.mxu0 0.0
        %482 = vmatpush2.msra.mxu0 0.0
        %483 = vmatprep.subr.mxu0 0.0
        %484 = vmatpush2.msra.mxu0 0.0
        %485 = vmatprep.subr.mxu0 0.0
        %486 = vmatpush2.msra.mxu0 0.0
        %487 = vmatprep.subr.mxu0 0.0
        %488 = vmatpush2.msra.mxu0 0.0
        %489 = vmatprep.subr.mxu0 0.0
        %490 = vmatpush2.msra.mxu0 0.0
        %491 = vmatprep.subr.mxu0 0.0
        %492 = vmatpush2.msra.mxu0 0.0
        %493 = vmatprep.subr.mxu0 0.0
        %494 = vmatpush2.msra.mxu0 0.0
        %495 = vmatprep.subr.mxu0 0.0
        %496 = vmatpush2.msra.mxu0 0.0
        %497 = vmatprep.subr.mxu0 0.0
        %498 = vmatpush2.msra.mxu0 0.0
        %499 = vmatprep.subr.mxu0 0.0
        %500 = vmatpush2.msra.mxu0 0.0
        %501 = vmatprep.subr.mxu0 0.0
        %502 = vmatpush2.msra.mxu0 0.0
        %503 = vmatprep.subr.mxu0 0.0
        %504 = vmatpush2.msra.mxu0 0.0
        %505 = vmatprep.mubr.f32.mxu0 0.0
        %506 = vmatmul.mubr.f32.gmra.mxu0 %v439
        %v507 = vpop.f32.mrf.mxu0
        %v508 = vadd.f32 0.0, %v507
        %v509 = vpop.f32.mrf.mxu0
        %510 = vdwg.mxu0
        %v511 = vadd.f32 %v436, %v508
        %v512 = vxor.u32 %v511, 2147483648
        %v513 = vmul.f32 %v512, 1.442695
        %v514 = vpow.pop %v513
        %v515 = vadd.f32 %v514, 1.0
        %v516 = vrcp.pop %v515
        %v517 = vmul.f32 1.0, %v516
        %v518 = vtanh.pop %v511
        %520 = vrot.lane.b32.xlu0 %v435, 32
        %v521 = vpop.permute.xlu0 %520
        %v523 = vmul.f32 %v517, %v521
        %525 = vrot.lane.b32.xlu0 %v518, 32
        %v526 = vpop.permute.xlu0 %525
        %v528 = vmul.f32 %v517, %v526
        %530 = vrot.lane.b32.xlu0 %v528, 32
        %v531 = vpop.permute.xlu0 %530
        %v533 = vadd.f32 %v523, %v531
        %v534 = vtanh.pop %v533
        %536 = vrot.lane.b32.xlu0 %v534, 32
        %v537 = vpop.permute.xlu0 %536
        %v539 = vmul.f32 %v517, %v537
        %v540 = vstv %s433
        %vm541 = vcmp.lt.s32.totalorder %v540, %v432
        %v542 = vsel %vm541, 1, 0
        %543 = vset.pattern.permute.xlu0 0
        %544 = vperm.xlu0 %543, %v542
        %v545 = vpop.permute.xlu0 %544
        %vm546 = vcmp.eq.s32.totalorder %v545, 1
        %547 = vrot.lane.b32.xlu0 %v434, 64
        %v548 = vpop.permute.xlu0 %547
        %v550 = vsel %vm546, %v539, %v548
        %v551 = vsel %vm546, %v533, %v521
        %s552 = scalar_lea.vmem [#allocation4], 8
        %v553 = vld [vmem:[%s552] sm:$0xff]
        %555 = vrot.lane.b32.xlu0 %v550, 64
        %v556 = vpop.permute.xlu0 %555
        %v557 = vsel %vm437, %v556, 0
        %559 = vmatprep.subr.mxu0 0.0
        %560 = vmatpush1.msra.mxu0 0.0
        %561 = vmatprep.subr.mxu0 0.0
        %562 = vmatpush1.msra.mxu0 0.0
        %563 = vmatprep.subr.mxu0 0.0
        %564 = vmatpush1.msra.mxu0 0.0
        %565 = vmatprep.subr.mxu0 0.0
        %566 = vmatpush1.msra.mxu0 0.0
        %567 = vmatprep.subr.mxu0 0.0
        %568 = vmatpush1.msra.mxu0 0.0
        %569 = vmatprep.subr.mxu0 0.0
        %570 = vmatpush1.msra.mxu0 0.0
        %571 = vmatprep.subr.mxu0 0.0
        %572 = vmatpush1.msra.mxu0 0.0
        %573 = vmatprep.subr.mxu0 0.0
        %574 = vmatpush1.msra.mxu0 0.0
        %575 = vmatprep.subr.mxu0 0.0
        %576 = vmatpush1.msra.mxu0 0.0
        %577 = vmatprep.subr.mxu0 0.0
        %578 = vmatpush1.msra.mxu0 0.0
        %579 = vmatprep.subr.mxu0 0.0
        %580 = vmatpush1.msra.mxu0 0.0
        %581 = vmatprep.subr.mxu0 0.0
        %582 = vmatpush1.msra.mxu0 0.0
        %583 = vmatprep.subr.mxu0 0.0
        %584 = vmatpush1.msra.mxu0 %v431
        %585 = vmatprep.subr.mxu0 0.0
        %586 = vmatpush1.msra.mxu0 %v430
        %587 = vmatprep.subr.mxu0 0.0
        %588 = vmatpush1.msra.mxu0 %v429
        %589 = vmatprep.subr.mxu0 0.0
        %590 = vmatpush1.msra.mxu0 %v428
        %591 = vmatprep.subr.mxu0 0.0
        %592 = vmatpush2.msra.mxu0 0.0
        %593 = vmatprep.subr.mxu0 0.0
        %594 = vmatpush2.msra.mxu0 0.0
        %595 = vmatprep.subr.mxu0 0.0
        %596 = vmatpush2.msra.mxu0 0.0
        %597 = vmatprep.subr.mxu0 0.0
        %598 = vmatpush2.msra.mxu0 0.0
        %599 = vmatprep.subr.mxu0 0.0
        %600 = vmatpush2.msra.mxu0 0.0
        %601 = vmatprep.subr.mxu0 0.0
        %602 = vmatpush2.msra.mxu0 0.0
        %603 = vmatprep.subr.mxu0 0.0
        %604 = vmatpush2.msra.mxu0 0.0
        %605 = vmatprep.subr.mxu0 0.0
        %606 = vmatpush2.msra.mxu0 0.0
        %607 = vmatprep.subr.mxu0 0.0
        %608 = vmatpush2.msra.mxu0 0.0
        %609 = vmatprep.subr.mxu0 0.0
        %610 = vmatpush2.msra.mxu0 0.0
        %611 = vmatprep.subr.mxu0 0.0
        %612 = vmatpush2.msra.mxu0 0.0
        %613 = vmatprep.subr.mxu0 0.0
        %614 = vmatpush2.msra.mxu0 0.0
        %615 = vmatprep.subr.mxu0 0.0
        %616 = vmatpush2.msra.mxu0 0.0
        %617 = vmatprep.subr.mxu0 0.0
        %618 = vmatpush2.msra.mxu0 0.0
        %619 = vmatprep.subr.mxu0 0.0
        %620 = vmatpush2.msra.mxu0 0.0
        %621 = vmatprep.subr.mxu0 0.0
        %622 = vmatpush2.msra.mxu0 0.0
        %623 = vmatprep.mubr.f32.mxu0 0.0
        %624 = vmatmul.mubr.f32.gmra.mxu0 %v557
        %v625 = vpop.f32.mrf.mxu0
        %v626 = vadd.f32 0.0, %v625
        %v627 = vpop.f32.mrf.mxu0
        %628 = vdwg.mxu0
        %v629 = vadd.f32 %v553, %v626
        %v630 = vxor.u32 %v629, 2147483648
        %v631 = vmul.f32 %v630, 1.442695
        %v632 = vpow.pop %v631
        %v633 = vadd.f32 %v632, 1.0
        %v634 = vrcp.pop %v633
        %v635 = vmul.f32 1.0, %v634
        %v636 = vtanh.pop %v629
        %v637 = vmul.f32 %v635, %v551
        %639 = vrot.lane.b32.xlu0 %v636, 32
        %v640 = vpop.permute.xlu0 %639
        %v642 = vmul.f32 %v635, %v640
        %644 = vrot.lane.b32.xlu0 %v642, 32
        %v645 = vpop.permute.xlu0 %644
        %v647 = vadd.f32 %v637, %v645
        %v648 = vtanh.pop %v647
        %650 = vrot.lane.b32.xlu0 %v648, 32
        %v651 = vpop.permute.xlu0 %650
        %v653 = vmul.f32 %v635, %v651
        %s654 = sadd.s32 %s433, 1
        %v655 = vstv %s654
        %vm656 = vcmp.lt.s32.totalorder %v655, %v432
        %v657 = vsel %vm656, 1, 0
        %658 = vset.pattern.permute.xlu0 0
        %659 = vperm.xlu0 %658, %v657
        %v660 = vpop.permute.xlu0 %659
        %vm661 = vcmp.eq.s32.totalorder %v660, 1
        %v662 = vsel %vm661, %v653, %v550
        %v663 = vsel %vm661, %v647, %v551
        %s664 = scalar_lea.vmem [#allocation4], 16
        %v665 = vld [vmem:[%s664] sm:$0xff]
        %667 = vrot.lane.b32.xlu0 %v662, 64
        %v668 = vpop.permute.xlu0 %667
        %v669 = vsel %vm437, %v668, 0
        %671 = vmatprep.subr.mxu0 0.0
        %672 = vmatpush1.msra.mxu0 0.0
        %673 = vmatprep.subr.mxu0 0.0
        %674 = vmatpush1.msra.mxu0 0.0
        %675 = vmatprep.subr.mxu0 0.0
        %676 = vmatpush1.msra.mxu0 0.0
        %677 = vmatprep.subr.mxu0 0.0
        %678 = vmatpush1.msra.mxu0 0.0
        %679 = vmatprep.subr.mxu0 0.0
        %680 = vmatpush1.msra.mxu0 0.0
        %681 = vmatprep.subr.mxu0 0.0
        %682 = vmatpush1.msra.mxu0 0.0
        %683 = vmatprep.subr.mxu0 0.0
        %684 = vmatpush1.msra.mxu0 0.0
        %685 = vmatprep.subr.mxu0 0.0
        %686 = vmatpush1.msra.mxu0 0.0
        %687 = vmatprep.subr.mxu0 0.0
        %688 = vmatpush1.msra.mxu0 0.0
        %689 = vmatprep.subr.mxu0 0.0
        %690 = vmatpush1.msra.mxu0 0.0
        %691 = vmatprep.subr.mxu0 0.0
        %692 = vmatpush1.msra.mxu0 0.0
        %693 = vmatprep.subr.mxu0 0.0
        %694 = vmatpush1.msra.mxu0 0.0
        %695 = vmatprep.subr.mxu0 0.0
        %696 = vmatpush1.msra.mxu0 %v431
        %697 = vmatprep.subr.mxu0 0.0
        %698 = vmatpush1.msra.mxu0 %v430
        %699 = vmatprep.subr.mxu0 0.0
        %700 = vmatpush1.msra.mxu0 %v429
        %701 = vmatprep.subr.mxu0 0.0
        %702 = vmatpush1.msra.mxu0 %v428
        %703 = vmatprep.subr.mxu0 0.0
        %704 = vmatpush2.msra.mxu0 0.0
        %705 = vmatprep.subr.mxu0 0.0
        %706 = vmatpush2.msra.mxu0 0.0
        %707 = vmatprep.subr.mxu0 0.0
        %708 = vmatpush2.msra.mxu0 0.0
        %709 = vmatprep.subr.mxu0 0.0
        %710 = vmatpush2.msra.mxu0 0.0
        %711 = vmatprep.subr.mxu0 0.0
        %712 = vmatpush2.msra.mxu0 0.0
        %713 = vmatprep.subr.mxu0 0.0
        %714 = vmatpush2.msra.mxu0 0.0
        %715 = vmatprep.subr.mxu0 0.0
        %716 = vmatpush2.msra.mxu0 0.0
        %717 = vmatprep.subr.mxu0 0.0
        %718 = vmatpush2.msra.mxu0 0.0
        %719 = vmatprep.subr.mxu0 0.0
        %720 = vmatpush2.msra.mxu0 0.0
        %721 = vmatprep.subr.mxu0 0.0
        %722 = vmatpush2.msra.mxu0 0.0
        %723 = vmatprep.subr.mxu0 0.0
        %724 = vmatpush2.msra.mxu0 0.0
        %725 = vmatprep.subr.mxu0 0.0
        %726 = vmatpush2.msra.mxu0 0.0
        %727 = vmatprep.subr.mxu0 0.0
        %728 = vmatpush2.msra.mxu0 0.0
        %729 = vmatprep.subr.mxu0 0.0
        %730 = vmatpush2.msra.mxu0 0.0
        %731 = vmatprep.subr.mxu0 0.0
        %732 = vmatpush2.msra.mxu0 0.0
        %733 = vmatprep.subr.mxu0 0.0
        %734 = vmatpush2.msra.mxu0 0.0
        %735 = vmatprep.mubr.f32.mxu0 0.0
        %736 = vmatmul.mubr.f32.gmra.mxu0 %v669
        %v737 = vpop.f32.mrf.mxu0
        %v738 = vadd.f32 0.0, %v737
        %v739 = vpop.f32.mrf.mxu0
        %740 = vdwg.mxu0
        %v741 = vadd.f32 %v665, %v738
        %v742 = vxor.u32 %v741, 2147483648
        %v743 = vmul.f32 %v742, 1.442695
        %v744 = vpow.pop %v743
        %v745 = vadd.f32 %v744, 1.0
        %v746 = vrcp.pop %v745
        %v747 = vmul.f32 1.0, %v746
        %v748 = vtanh.pop %v741
        %v749 = vmul.f32 %v747, %v663
        %751 = vrot.lane.b32.xlu0 %v748, 32
        %v752 = vpop.permute.xlu0 %751
        %v754 = vmul.f32 %v747, %v752
        %756 = vrot.lane.b32.xlu0 %v754, 32
        %v757 = vpop.permute.xlu0 %756
        %v759 = vadd.f32 %v749, %v757
        %v760 = vtanh.pop %v759
        %762 = vrot.lane.b32.xlu0 %v760, 32
        %v763 = vpop.permute.xlu0 %762
        %v765 = vmul.f32 %v747, %v763
        %s766 = sadd.s32 %s433, 2
        %v767 = vstv %s766
        %vm768 = vcmp.lt.s32.totalorder %v767, %v432
        %v769 = vsel %vm768, 1, 0
        %770 = vset.pattern.permute.xlu0 0
        %771 = vperm.xlu0 %770, %v769
        %v772 = vpop.permute.xlu0 %771
        %vm773 = vcmp.eq.s32.totalorder %v772, 1
        %v774 = vsel %vm773, %v765, %v662
        %v775 = vsel %vm773, %v759, %v663
        %s776 = scalar_lea.vmem [#allocation4], 24
        %v777 = vld [vmem:[%s776] sm:$0xff]
        %779 = vrot.lane.b32.xlu0 %v774, 64
        %v780 = vpop.permute.xlu0 %779
        %v781 = vsel %vm437, %v780, 0
        %783 = vmatprep.subr.mxu0 0.0
        %784 = vmatpush1.msra.mxu0 0.0
        %785 = vmatprep.subr.mxu0 0.0
        %786 = vmatpush1.msra.mxu0 0.0
        %787 = vmatprep.subr.mxu0 0.0
        %788 = vmatpush1.msra.mxu0 0.0
        %789 = vmatprep.subr.mxu0 0.0
        %790 = vmatpush1.msra.mxu0 0.0
        %791 = vmatprep.subr.mxu0 0.0
        %792 = vmatpush1.msra.mxu0 0.0
        %793 = vmatprep.subr.mxu0 0.0
        %794 = vmatpush1.msra.mxu0 0.0
        %795 = vmatprep.subr.mxu0 0.0
        %796 = vmatpush1.msra.mxu0 0.0
        %797 = vmatprep.subr.mxu0 0.0
        %798 = vmatpush1.msra.mxu0 0.0
        %799 = vmatprep.subr.mxu0 0.0
        %800 = vmatpush1.msra.mxu0 0.0
        %801 = vmatprep.subr.mxu0 0.0
        %802 = vmatpush1.msra.mxu0 0.0
        %803 = vmatprep.subr.mxu0 0.0
        %804 = vmatpush1.msra.mxu0 0.0
        %805 = vmatprep.subr.mxu0 0.0
        %806 = vmatpush1.msra.mxu0 0.0
        %807 = vmatprep.subr.mxu0 0.0
        %808 = vmatpush1.msra.mxu0 %v431
        %809 = vmatprep.subr.mxu0 0.0
        %810 = vmatpush1.msra.mxu0 %v430
        %811 = vmatprep.subr.mxu0 0.0
        %812 = vmatpush1.msra.mxu0 %v429
        %813 = vmatprep.subr.mxu0 0.0
        %814 = vmatpush1.msra.mxu0 %v428
        %815 = vmatprep.subr.mxu0 0.0
        %816 = vmatpush2.msra.mxu0 0.0
        %817 = vmatprep.subr.mxu0 0.0
        %818 = vmatpush2.msra.mxu0 0.0
        %819 = vmatprep.subr.mxu0 0.0
        %820 = vmatpush2.msra.mxu0 0.0
        %821 = vmatprep.subr.mxu0 0.0
        %822 = vmatpush2.msra.mxu0 0.0
        %823 = vmatprep.subr.mxu0 0.0
        %824 = vmatpush2.msra.mxu0 0.0
        %825 = vmatprep.subr.mxu0 0.0
        %826 = vmatpush2.msra.mxu0 0.0
        %827 = vmatprep.subr.mxu0 0.0
        %828 = vmatpush2.msra.mxu0 0.0
        %829 = vmatprep.subr.mxu0 0.0
        %830 = vmatpush2.msra.mxu0 0.0
        %831 = vmatprep.subr.mxu0 0.0
        %832 = vmatpush2.msra.mxu0 0.0
        %833 = vmatprep.subr.mxu0 0.0
        %834 = vmatpush2.msra.mxu0 0.0
        %835 = vmatprep.subr.mxu0 0.0
        %836 = vmatpush2.msra.mxu0 0.0
        %837 = vmatprep.subr.mxu0 0.0
        %838 = vmatpush2.msra.mxu0 0.0
        %839 = vmatprep.subr.mxu0 0.0
        %840 = vmatpush2.msra.mxu0 0.0
        %841 = vmatprep.subr.mxu0 0.0
        %842 = vmatpush2.msra.mxu0 0.0
        %843 = vmatprep.subr.mxu0 0.0
        %844 = vmatpush2.msra.mxu0 0.0
        %845 = vmatprep.subr.mxu0 0.0
        %846 = vmatpush2.msra.mxu0 0.0
        %847 = vmatprep.mubr.f32.mxu0 0.0
        %848 = vmatmul.mubr.f32.gmra.mxu0 %v781
        %v849 = vpop.f32.mrf.mxu0
        %v850 = vadd.f32 0.0, %v849
        %v851 = vpop.f32.mrf.mxu0
        %852 = vdwg.mxu0
        %v853 = vadd.f32 %v777, %v850
        %v854 = vxor.u32 %v853, 2147483648
        %v855 = vmul.f32 %v854, 1.442695
        %v856 = vpow.pop %v855
        %v857 = vadd.f32 %v856, 1.0
        %v858 = vrcp.pop %v857
        %v859 = vmul.f32 1.0, %v858
        %v860 = vtanh.pop %v853
        %v861 = vmul.f32 %v859, %v775
        %863 = vrot.lane.b32.xlu0 %v860, 32
        %v864 = vpop.permute.xlu0 %863
        %v866 = vmul.f32 %v859, %v864
        %868 = vrot.lane.b32.xlu0 %v866, 32
        %v869 = vpop.permute.xlu0 %868
        %v871 = vadd.f32 %v861, %v869
        %v872 = vtanh.pop %v871
        %874 = vrot.lane.b32.xlu0 %v872, 32
        %v875 = vpop.permute.xlu0 %874
        %v877 = vmul.f32 %v859, %v875
        %s878 = sadd.s32 %s433, 3
        %v879 = vstv %s878
        %vm880 = vcmp.lt.s32.totalorder %v879, %v432
        %v881 = vsel %vm880, 1, 0
        %882 = vset.pattern.permute.xlu0 0
        %883 = vperm.xlu0 %882, %v881
        %v884 = vpop.permute.xlu0 %883
        %vm885 = vcmp.eq.s32.totalorder %v884, 1
        %v886 = vsel %vm885, %v877, %v774
        %v887 = vsel %vm885, %v871, %v775
        %s888 = scalar_lea.vmem [#allocation4], 32
        %v889 = vld [vmem:[%s888] sm:$0xff]
        %891 = vrot.lane.b32.xlu0 %v886, 64
        %v892 = vpop.permute.xlu0 %891
        %v893 = vsel %vm437, %v892, 0
        %895 = vmatprep.subr.mxu0 0.0
        %896 = vmatpush1.msra.mxu0 0.0
        %897 = vmatprep.subr.mxu0 0.0
        %898 = vmatpush1.msra.mxu0 0.0
        %899 = vmatprep.subr.mxu0 0.0
        %900 = vmatpush1.msra.mxu0 0.0
        %901 = vmatprep.subr.mxu0 0.0
        %902 = vmatpush1.msra.mxu0 0.0
        %903 = vmatprep.subr.mxu0 0.0
        %904 = vmatpush1.msra.mxu0 0.0
        %905 = vmatprep.subr.mxu0 0.0
        %906 = vmatpush1.msra.mxu0 0.0
        %907 = vmatprep.subr.mxu0 0.0
        %908 = vmatpush1.msra.mxu0 0.0
        %909 = vmatprep.subr.mxu0 0.0
        %910 = vmatpush1.msra.mxu0 0.0
        %911 = vmatprep.subr.mxu0 0.0
        %912 = vmatpush1.msra.mxu0 0.0
        %913 = vmatprep.subr.mxu0 0.0
        %914 = vmatpush1.msra.mxu0 0.0
        %915 = vmatprep.subr.mxu0 0.0
        %916 = vmatpush1.msra.mxu0 0.0
        %917 = vmatprep.subr.mxu0 0.0
        %918 = vmatpush1.msra.mxu0 0.0
        %919 = vmatprep.subr.mxu0 0.0
        %920 = vmatpush1.msra.mxu0 %v431
        %921 = vmatprep.subr.mxu0 0.0
        %922 = vmatpush1.msra.mxu0 %v430
        %923 = vmatprep.subr.mxu0 0.0
        %924 = vmatpush1.msra.mxu0 %v429
        %925 = vmatprep.subr.mxu0 0.0
        %926 = vmatpush1.msra.mxu0 %v428
        %927 = vmatprep.subr.mxu0 0.0
        %928 = vmatpush2.msra.mxu0 0.0
        %929 = vmatprep.subr.mxu0 0.0
        %930 = vmatpush2.msra.mxu0 0.0
        %931 = vmatprep.subr.mxu0 0.0
        %932 = vmatpush2.msra.mxu0 0.0
        %933 = vmatprep.subr.mxu0 0.0
        %934 = vmatpush2.msra.mxu0 0.0
        %935 = vmatprep.subr.mxu0 0.0
        %936 = vmatpush2.msra.mxu0 0.0
        %937 = vmatprep.subr.mxu0 0.0
        %938 = vmatpush2.msra.mxu0 0.0
        %939 = vmatprep.subr.mxu0 0.0
        %940 = vmatpush2.msra.mxu0 0.0
        %941 = vmatprep.subr.mxu0 0.0
        %942 = vmatpush2.msra.mxu0 0.0
        %943 = vmatprep.subr.mxu0 0.0
        %944 = vmatpush2.msra.mxu0 0.0
        %945 = vmatprep.subr.mxu0 0.0
        %946 = vmatpush2.msra.mxu0 0.0
        %947 = vmatprep.subr.mxu0 0.0
        %948 = vmatpush2.msra.mxu0 0.0
        %949 = vmatprep.subr.mxu0 0.0
        %950 = vmatpush2.msra.mxu0 0.0
        %951 = vmatprep.subr.mxu0 0.0
        %952 = vmatpush2.msra.mxu0 0.0
        %953 = vmatprep.subr.mxu0 0.0
        %954 = vmatpush2.msra.mxu0 0.0
        %955 = vmatprep.subr.mxu0 0.0
        %956 = vmatpush2.msra.mxu0 0.0
        %957 = vmatprep.subr.mxu0 0.0
        %958 = vmatpush2.msra.mxu0 0.0
        %959 = vmatprep.mubr.f32.mxu0 0.0
        %960 = vmatmul.mubr.f32.gmra.mxu0 %v893
        %v961 = vpop.f32.mrf.mxu0
        %v962 = vadd.f32 0.0, %v961
        %v963 = vpop.f32.mrf.mxu0
        %964 = vdwg.mxu0
        %v965 = vadd.f32 %v889, %v962
        %v966 = vxor.u32 %v965, 2147483648
        %v967 = vmul.f32 %v966, 1.442695
        %v968 = vpow.pop %v967
        %v969 = vadd.f32 %v968, 1.0
        %v970 = vrcp.pop %v969
        %v971 = vmul.f32 1.0, %v970
        %v972 = vtanh.pop %v965
        %v973 = vmul.f32 %v971, %v887
        %975 = vrot.lane.b32.xlu0 %v972, 32
        %v976 = vpop.permute.xlu0 %975
        %v978 = vmul.f32 %v971, %v976
        %980 = vrot.lane.b32.xlu0 %v978, 32
        %v981 = vpop.permute.xlu0 %980
        %v983 = vadd.f32 %v973, %v981
        %v984 = vtanh.pop %v983
        %986 = vrot.lane.b32.xlu0 %v984, 32
        %v987 = vpop.permute.xlu0 %986
        %v989 = vmul.f32 %v971, %v987
        %s990 = sadd.s32 %s433, 4
        %v991 = vstv %s990
        %vm992 = vcmp.lt.s32.totalorder %v991, %v432
        %v993 = vsel %vm992, 1, 0
        %994 = vset.pattern.permute.xlu0 0
        %995 = vperm.xlu0 %994, %v993
        %v996 = vpop.permute.xlu0 %995
        %vm997 = vcmp.eq.s32.totalorder %v996, 1
        %v998 = vsel %vm997, %v989, %v886
        %v999 = vsel %vm997, %v983, %v887
        %s1000 = scalar_lea.vmem [#allocation4], 40
        %v1001 = vld [vmem:[%s1000] sm:$0xff]
        %1003 = vrot.lane.b32.xlu0 %v998, 64
        %v1004 = vpop.permute.xlu0 %1003
        %v1005 = vsel %vm437, %v1004, 0
        %1007 = vmatprep.subr.mxu0 0.0
        %1008 = vmatpush1.msra.mxu0 0.0
        %1009 = vmatprep.subr.mxu0 0.0
        %1010 = vmatpush1.msra.mxu0 0.0
        %1011 = vmatprep.subr.mxu0 0.0
        %1012 = vmatpush1.msra.mxu0 0.0
        %1013 = vmatprep.subr.mxu0 0.0
        %1014 = vmatpush1.msra.mxu0 0.0
        %1015 = vmatprep.subr.mxu0 0.0
        %1016 = vmatpush1.msra.mxu0 0.0
        %1017 = vmatprep.subr.mxu0 0.0
        %1018 = vmatpush1.msra.mxu0 0.0
        %1019 = vmatprep.subr.mxu0 0.0
        %1020 = vmatpush1.msra.mxu0 0.0
        %1021 = vmatprep.subr.mxu0 0.0
        %1022 = vmatpush1.msra.mxu0 0.0
        %1023 = vmatprep.subr.mxu0 0.0
        %1024 = vmatpush1.msra.mxu0 0.0
        %1025 = vmatprep.subr.mxu0 0.0
        %1026 = vmatpush1.msra.mxu0 0.0
        %1027 = vmatprep.subr.mxu0 0.0
        %1028 = vmatpush1.msra.mxu0 0.0
        %1029 = vmatprep.subr.mxu0 0.0
        %1030 = vmatpush1.msra.mxu0 0.0
        %1031 = vmatprep.subr.mxu0 0.0
        %1032 = vmatpush1.msra.mxu0 %v431
        %1033 = vmatprep.subr.mxu0 0.0
        %1034 = vmatpush1.msra.mxu0 %v430
        %1035 = vmatprep.subr.mxu0 0.0
        %1036 = vmatpush1.msra.mxu0 %v429
        %1037 = vmatprep.subr.mxu0 0.0
        %1038 = vmatpush1.msra.mxu0 %v428
        %1039 = vmatprep.subr.mxu0 0.0
        %1040 = vmatpush2.msra.mxu0 0.0
        %1041 = vmatprep.subr.mxu0 0.0
        %1042 = vmatpush2.msra.mxu0 0.0
        %1043 = vmatprep.subr.mxu0 0.0
        %1044 = vmatpush2.msra.mxu0 0.0
        %1045 = vmatprep.subr.mxu0 0.0
        %1046 = vmatpush2.msra.mxu0 0.0
        %1047 = vmatprep.subr.mxu0 0.0
        %1048 = vmatpush2.msra.mxu0 0.0
        %1049 = vmatprep.subr.mxu0 0.0
        %1050 = vmatpush2.msra.mxu0 0.0
        %1051 = vmatprep.subr.mxu0 0.0
        %1052 = vmatpush2.msra.mxu0 0.0
        %1053 = vmatprep.subr.mxu0 0.0
        %1054 = vmatpush2.msra.mxu0 0.0
        %1055 = vmatprep.subr.mxu0 0.0
        %1056 = vmatpush2.msra.mxu0 0.0
        %1057 = vmatprep.subr.mxu0 0.0
        %1058 = vmatpush2.msra.mxu0 0.0
        %1059 = vmatprep.subr.mxu0 0.0
        %1060 = vmatpush2.msra.mxu0 0.0
        %1061 = vmatprep.subr.mxu0 0.0
        %1062 = vmatpush2.msra.mxu0 0.0
        %1063 = vmatprep.subr.mxu0 0.0
        %1064 = vmatpush2.msra.mxu0 0.0
        %1065 = vmatprep.subr.mxu0 0.0
        %1066 = vmatpush2.msra.mxu0 0.0
        %1067 = vmatprep.subr.mxu0 0.0
        %1068 = vmatpush2.msra.mxu0 0.0
        %1069 = vmatprep.subr.mxu0 0.0
        %1070 = vmatpush2.msra.mxu0 0.0
        %1071 = vmatprep.mubr.f32.mxu0 0.0
        %1072 = vmatmul.mubr.f32.gmra.mxu0 %v1005
        %v1073 = vpop.f32.mrf.mxu0
        %v1074 = vadd.f32 0.0, %v1073
        %v1075 = vpop.f32.mrf.mxu0
        %1076 = vdwg.mxu0
        %v1077 = vadd.f32 %v1001, %v1074
        %v1078 = vxor.u32 %v1077, 2147483648
        %v1079 = vmul.f32 %v1078, 1.442695
        %v1080 = vpow.pop %v1079
        %v1081 = vadd.f32 %v1080, 1.0
        %v1082 = vrcp.pop %v1081
        %v1083 = vmul.f32 1.0, %v1082
        %v1084 = vtanh.pop %v1077
        %v1085 = vmul.f32 %v1083, %v999
        %1087 = vrot.lane.b32.xlu0 %v1084, 32
        %v1088 = vpop.permute.xlu0 %1087
        %v1090 = vmul.f32 %v1083, %v1088
        %1092 = vrot.lane.b32.xlu0 %v1090, 32
        %v1093 = vpop.permute.xlu0 %1092
        %v1095 = vadd.f32 %v1085, %v1093
        %v1096 = vtanh.pop %v1095
        %1098 = vrot.lane.b32.xlu0 %v1096, 32
        %v1099 = vpop.permute.xlu0 %1098
        %v1101 = vmul.f32 %v1083, %v1099
        %s1102 = sadd.s32 %s433, 5
        %v1103 = vstv %s1102
        %vm1104 = vcmp.lt.s32.totalorder %v1103, %v432
        %v1105 = vsel %vm1104, 1, 0
        %1106 = vset.pattern.permute.xlu0 0
        %1107 = vperm.xlu0 %1106, %v1105
        %v1108 = vpop.permute.xlu0 %1107
        %vm1109 = vcmp.eq.s32.totalorder %v1108, 1
        %v1110 = vsel %vm1109, %v1101, %v998
        %v1111 = vsel %vm1109, %v1095, %v999
        %s1112 = scalar_lea.vmem [#allocation4], 48
        %v1113 = vld [vmem:[%s1112] sm:$0xff]
        %1115 = vrot.lane.b32.xlu0 %v1110, 64
        %v1116 = vpop.permute.xlu0 %1115
        %v1117 = vsel %vm437, %v1116, 0
        %1119 = vmatprep.subr.mxu0 0.0
        %1120 = vmatpush1.msra.mxu0 0.0
        %1121 = vmatprep.subr.mxu0 0.0
        %1122 = vmatpush1.msra.mxu0 0.0
        %1123 = vmatprep.subr.mxu0 0.0
        %1124 = vmatpush1.msra.mxu0 0.0
        %1125 = vmatprep.subr.mxu0 0.0
        %1126 = vmatpush1.msra.mxu0 0.0
        %1127 = vmatprep.subr.mxu0 0.0
        %1128 = vmatpush1.msra.mxu0 0.0
        %1129 = vmatprep.subr.mxu0 0.0
        %1130 = vmatpush1.msra.mxu0 0.0
        %1131 = vmatprep.subr.mxu0 0.0
        %1132 = vmatpush1.msra.mxu0 0.0
        %1133 = vmatprep.subr.mxu0 0.0
        %1134 = vmatpush1.msra.mxu0 0.0
        %1135 = vmatprep.subr.mxu0 0.0
        %1136 = vmatpush1.msra.mxu0 0.0
        %1137 = vmatprep.subr.mxu0 0.0
        %1138 = vmatpush1.msra.mxu0 0.0
        %1139 = vmatprep.subr.mxu0 0.0
        %1140 = vmatpush1.msra.mxu0 0.0
        %1141 = vmatprep.subr.mxu0 0.0
        %1142 = vmatpush1.msra.mxu0 0.0
        %1143 = vmatprep.subr.mxu0 0.0
        %1144 = vmatpush1.msra.mxu0 %v431
        %1145 = vmatprep.subr.mxu0 0.0
        %1146 = vmatpush1.msra.mxu0 %v430
        %1147 = vmatprep.subr.mxu0 0.0
        %1148 = vmatpush1.msra.mxu0 %v429
        %1149 = vmatprep.subr.mxu0 0.0
        %1150 = vmatpush1.msra.mxu0 %v428
        %1151 = vmatprep.subr.mxu0 0.0
        %1152 = vmatpush2.msra.mxu0 0.0
        %1153 = vmatprep.subr.mxu0 0.0
        %1154 = vmatpush2.msra.mxu0 0.0
        %1155 = vmatprep.subr.mxu0 0.0
        %1156 = vmatpush2.msra.mxu0 0.0
        %1157 = vmatprep.subr.mxu0 0.0
        %1158 = vmatpush2.msra.mxu0 0.0
        %1159 = vmatprep.subr.mxu0 0.0
        %1160 = vmatpush2.msra.mxu0 0.0
        %1161 = vmatprep.subr.mxu0 0.0
        %1162 = vmatpush2.msra.mxu0 0.0
        %1163 = vmatprep.subr.mxu0 0.0
        %1164 = vmatpush2.msra.mxu0 0.0
        %1165 = vmatprep.subr.mxu0 0.0
        %1166 = vmatpush2.msra.mxu0 0.0
        %1167 = vmatprep.subr.mxu0 0.0
        %1168 = vmatpush2.msra.mxu0 0.0
        %1169 = vmatprep.subr.mxu0 0.0
        %1170 = vmatpush2.msra.mxu0 0.0
        %1171 = vmatprep.subr.mxu0 0.0
        %1172 = vmatpush2.msra.mxu0 0.0
        %1173 = vmatprep.subr.mxu0 0.0
        %1174 = vmatpush2.msra.mxu0 0.0
        %1175 = vmatprep.subr.mxu0 0.0
        %1176 = vmatpush2.msra.mxu0 0.0
        %1177 = vmatprep.subr.mxu0 0.0
        %1178 = vmatpush2.msra.mxu0 0.0
        %1179 = vmatprep.subr.mxu0 0.0
        %1180 = vmatpush2.msra.mxu0 0.0
        %1181 = vmatprep.subr.mxu0 0.0
        %1182 = vmatpush2.msra.mxu0 0.0
        %1183 = vmatprep.mubr.f32.mxu0 0.0
        %1184 = vmatmul.mubr.f32.gmra.mxu0 %v1117
        %v1185 = vpop.f32.mrf.mxu0
        %v1186 = vadd.f32 0.0, %v1185
        %v1187 = vpop.f32.mrf.mxu0
        %1188 = vdwg.mxu0
        %v1189 = vadd.f32 %v1113, %v1186
        %v1190 = vxor.u32 %v1189, 2147483648
        %v1191 = vmul.f32 %v1190, 1.442695
        %v1192 = vpow.pop %v1191
        %v1193 = vadd.f32 %v1192, 1.0
        %v1194 = vrcp.pop %v1193
        %v1195 = vmul.f32 1.0, %v1194
        %v1196 = vtanh.pop %v1189
        %v1197 = vmul.f32 %v1195, %v1111
        %1199 = vrot.lane.b32.xlu0 %v1196, 32
        %v1200 = vpop.permute.xlu0 %1199
        %v1202 = vmul.f32 %v1195, %v1200
        %1204 = vrot.lane.b32.xlu0 %v1202, 32
        %v1205 = vpop.permute.xlu0 %1204
        %v1207 = vadd.f32 %v1197, %v1205
        %v1208 = vtanh.pop %v1207
        %1210 = vrot.lane.b32.xlu0 %v1208, 32
        %v1211 = vpop.permute.xlu0 %1210
        %v1213 = vmul.f32 %v1195, %v1211
        %s1214 = sadd.s32 %s433, 6
        %v1215 = vstv %s1214
        %vm1216 = vcmp.lt.s32.totalorder %v1215, %v432
        %v1217 = vsel %vm1216, 1, 0
        %1218 = vset.pattern.permute.xlu0 0
        %1219 = vperm.xlu0 %1218, %v1217
        %v1220 = vpop.permute.xlu0 %1219
        %vm1221 = vcmp.eq.s32.totalorder %v1220, 1
        %v1222 = vsel %vm1221, %v1213, %v1110
        %v1223 = vsel %vm1221, %v1207, %v1111
        %s1224 = scalar_lea.vmem [#allocation4], 56
        %v1225 = vld [vmem:[%s1224] sm:$0xff]
        %1227 = vrot.lane.b32.xlu0 %v1222, 64
        %v1228 = vpop.permute.xlu0 %1227
        %v1229 = vsel %vm437, %v1228, 0
        %1231 = vmatprep.subr.mxu0 0.0
        %1232 = vmatpush1.msra.mxu0 0.0
        %1233 = vmatprep.subr.mxu0 0.0
        %1234 = vmatpush1.msra.mxu0 0.0
        %1235 = vmatprep.subr.mxu0 0.0
        %1236 = vmatpush1.msra.mxu0 0.0
        %1237 = vmatprep.subr.mxu0 0.0
        %1238 = vmatpush1.msra.mxu0 0.0
        %1239 = vmatprep.subr.mxu0 0.0
        %1240 = vmatpush1.msra.mxu0 0.0
        %1241 = vmatprep.subr.mxu0 0.0
        %1242 = vmatpush1.msra.mxu0 0.0
        %1243 = vmatprep.subr.mxu0 0.0
        %1244 = vmatpush1.msra.mxu0 0.0
        %1245 = vmatprep.subr.mxu0 0.0
        %1246 = vmatpush1.msra.mxu0 0.0
        %1247 = vmatprep.subr.mxu0 0.0
        %1248 = vmatpush1.msra.mxu0 0.0
        %1249 = vmatprep.subr.mxu0 0.0
        %1250 = vmatpush1.msra.mxu0 0.0
        %1251 = vmatprep.subr.mxu0 0.0
        %1252 = vmatpush1.msra.mxu0 0.0
        %1253 = vmatprep.subr.mxu0 0.0
        %1254 = vmatpush1.msra.mxu0 0.0
        %1255 = vmatprep.subr.mxu0 0.0
        %1256 = vmatpush1.msra.mxu0 %v431
        %1257 = vmatprep.subr.mxu0 0.0
        %1258 = vmatpush1.msra.mxu0 %v430
        %1259 = vmatprep.subr.mxu0 0.0
        %1260 = vmatpush1.msra.mxu0 %v429
        %1261 = vmatprep.subr.mxu0 0.0
        %1262 = vmatpush1.msra.mxu0 %v428
        %1263 = vmatprep.subr.mxu0 0.0
        %1264 = vmatpush2.msra.mxu0 0.0
        %1265 = vmatprep.subr.mxu0 0.0
        %1266 = vmatpush2.msra.mxu0 0.0
        %1267 = vmatprep.subr.mxu0 0.0
        %1268 = vmatpush2.msra.mxu0 0.0
        %1269 = vmatprep.subr.mxu0 0.0
        %1270 = vmatpush2.msra.mxu0 0.0
        %1271 = vmatprep.subr.mxu0 0.0
        %1272 = vmatpush2.msra.mxu0 0.0
        %1273 = vmatprep.subr.mxu0 0.0
        %1274 = vmatpush2.msra.mxu0 0.0
        %1275 = vmatprep.subr.mxu0 0.0
        %1276 = vmatpush2.msra.mxu0 0.0
        %1277 = vmatprep.subr.mxu0 0.0
        %1278 = vmatpush2.msra.mxu0 0.0
        %1279 = vmatprep.subr.mxu0 0.0
        %1280 = vmatpush2.msra.mxu0 0.0
        %1281 = vmatprep.subr.mxu0 0.0
        %1282 = vmatpush2.msra.mxu0 0.0
        %1283 = vmatprep.subr.mxu0 0.0
        %1284 = vmatpush2.msra.mxu0 0.0
        %1285 = vmatprep.subr.mxu0 0.0
        %1286 = vmatpush2.msra.mxu0 0.0
        %1287 = vmatprep.subr.mxu0 0.0
        %1288 = vmatpush2.msra.mxu0 0.0
        %1289 = vmatprep.subr.mxu0 0.0
        %1290 = vmatpush2.msra.mxu0 0.0
        %1291 = vmatprep.subr.mxu0 0.0
        %1292 = vmatpush2.msra.mxu0 0.0
        %1293 = vmatprep.subr.mxu0 0.0
        %1294 = vmatpush2.msra.mxu0 0.0
        %1295 = vmatprep.mubr.f32.mxu0 0.0
        %1296 = vmatmul.mubr.f32.gmra.mxu0 %v1229
        %v1297 = vpop.f32.mrf.mxu0
        %v1298 = vadd.f32 0.0, %v1297
        %v1299 = vpop.f32.mrf.mxu0
        %1300 = vdwg.mxu0
        %v1301 = vadd.f32 %v1225, %v1298
        %v1302 = vxor.u32 %v1301, 2147483648
        %v1303 = vmul.f32 %v1302, 1.442695
        %v1304 = vpow.pop %v1303
        %v1305 = vadd.f32 %v1304, 1.0
        %v1306 = vrcp.pop %v1305
        %v1307 = vmul.f32 1.0, %v1306
        %v1308 = vtanh.pop %v1301
        %v1309 = vmul.f32 %v1307, %v1223
        %1311 = vrot.lane.b32.xlu0 %v1308, 32
        %v1312 = vpop.permute.xlu0 %1311
        %v1314 = vmul.f32 %v1307, %v1312
        %1316 = vrot.lane.b32.xlu0 %v1314, 32
        %v1317 = vpop.permute.xlu0 %1316
        %v1319 = vadd.f32 %v1309, %v1317
        %v1320 = vtanh.pop %v1319
        %1322 = vrot.lane.b32.xlu0 %v1320, 32
        %v1323 = vpop.permute.xlu0 %1322
        %v1325 = vmul.f32 %v1307, %v1323
        %s1326 = sadd.s32 %s433, 7
        %v1327 = vstv %s1326
        %vm1328 = vcmp.lt.s32.totalorder %v1327, %v432
        %v1329 = vsel %vm1328, 1, 0
        %1330 = vset.pattern.permute.xlu0 0
        %1331 = vperm.xlu0 %1330, %v1329
        %v1332 = vpop.permute.xlu0 %1331
        %vm1333 = vcmp.eq.s32.totalorder %v1332, 1
        %v1334 = vsel %vm1333, %v1325, %v1222
        %v1335 = vsel %vm1333, %v1319, %v1223
        %1337 = vrot.lane.b32.xlu0 %v1334, 64
        %v1338 = vpop.permute.xlu0 %1337
        %1340 = vst.msk [vmem:[#allocation2] sm:$0xff] %vm437, %v1338
        %1342 = vrot.lane.b32.xlu0 %v1335, 96
        %v1343 = vpop.permute.xlu0 %1342
        %1345 = vst.msk [vmem:[#allocation3] sm:$0xff] %vm437, %v1343
        %p1346 = scmp.eq.s32.totalorder %s19, 1
        // Predicated region
        $region53: #{tpu_custom_call.1} parent=47 // pred_check
          %p1347 = pneg %p1346
        $region54: #{tpu_custom_call.1} parent=47 // pred_check_branch
          %1349 = sbr.rel (%p1347) target = $region56
        $region55: #{tpu_custom_call.1} parent=47 // pred_region
          %v1350 = vld [vmem:[%s5] sm:$0xff]
          %v1351 = vld [vmem:[%s5 + $0x8] sm:$0xff]
          %v1352 = vld [vmem:[%s5 + $0x10] sm:$0xff]
          %v1353 = vld [vmem:[%s5 + $0x18] sm:$0xff]
          %v1354 = vld [vmem:[%s6] sm:$0x1]
          %v1356 = vlaneseq
          %v1357 = vshrl.u32 %v1356, 7
          %v1358 = vsub.s32 0, %v1357
          %v1359 = vrot.slane %v1354, %v1358
          %v1361 = vsel %vm437, %v1338, 0
          %1363 = vmatprep.subr.mxu0 0.0
          %1364 = vmatpush1.msra.mxu0 0.0
          %1365 = vmatprep.subr.mxu0 0.0
          %1366 = vmatpush1.msra.mxu0 0.0
          %1367 = vmatprep.subr.mxu0 0.0
          %1368 = vmatpush1.msra.mxu0 0.0
          %1369 = vmatprep.subr.mxu0 0.0
          %1370 = vmatpush1.msra.mxu0 0.0
          %1371 = vmatprep.subr.mxu0 0.0
          %1372 = vmatpush1.msra.mxu0 0.0
          %1373 = vmatprep.subr.mxu0 0.0
          %1374 = vmatpush1.msra.mxu0 0.0
          %1375 = vmatprep.subr.mxu0 0.0
          %1376 = vmatpush1.msra.mxu0 0.0
          %1377 = vmatprep.subr.mxu0 0.0
          %1378 = vmatpush1.msra.mxu0 0.0
          %1379 = vmatprep.subr.mxu0 0.0
          %1380 = vmatpush1.msra.mxu0 0.0
          %1381 = vmatprep.subr.mxu0 0.0
          %1382 = vmatpush1.msra.mxu0 0.0
          %1383 = vmatprep.subr.mxu0 0.0
          %1384 = vmatpush1.msra.mxu0 0.0
          %1385 = vmatprep.subr.mxu0 0.0
          %1386 = vmatpush1.msra.mxu0 0.0
          %1387 = vmatprep.subr.mxu0 0.0
          %1388 = vmatpush1.msra.mxu0 %v1353
          %1389 = vmatprep.subr.mxu0 0.0
          %1390 = vmatpush1.msra.mxu0 %v1352
          %1391 = vmatprep.subr.mxu0 0.0
          %1392 = vmatpush1.msra.mxu0 %v1351
          %1393 = vmatprep.subr.mxu0 0.0
          %1394 = vmatpush1.msra.mxu0 %v1350
          %1395 = vmatprep.subr.mxu0 0.0
          %1396 = vmatpush2.msra.mxu0 0.0
          %1397 = vmatprep.subr.mxu0 0.0
          %1398 = vmatpush2.msra.mxu0 0.0
          %1399 = vmatprep.subr.mxu0 0.0
          %1400 = vmatpush2.msra.mxu0 0.0
          %1401 = vmatprep.subr.mxu0 0.0
          %1402 = vmatpush2.msra.mxu0 0.0
          %1403 = vmatprep.subr.mxu0 0.0
          %1404 = vmatpush2.msra.mxu0 0.0
          %1405 = vmatprep.subr.mxu0 0.0
          %1406 = vmatpush2.msra.mxu0 0.0
          %1407 = vmatprep.subr.mxu0 0.0
          %1408 = vmatpush2.msra.mxu0 0.0
          %1409 = vmatprep.subr.mxu0 0.0
          %1410 = vmatpush2.msra.mxu0 0.0
          %1411 = vmatprep.subr.mxu0 0.0
          %1412 = vmatpush2.msra.mxu0 0.0
          %1413 = vmatprep.subr.mxu0 0.0
          %1414 = vmatpush2.msra.mxu0 0.0
          %1415 = vmatprep.subr.mxu0 0.0
          %1416 = vmatpush2.msra.mxu0 0.0
          %1417 = vmatprep.subr.mxu0 0.0
          %1418 = vmatpush2.msra.mxu0 0.0
          %1419 = vmatprep.subr.mxu0 0.0
          %1420 = vmatpush2.msra.mxu0 0.0
          %1421 = vmatprep.subr.mxu0 0.0
          %1422 = vmatpush2.msra.mxu0 0.0
          %1423 = vmatprep.subr.mxu0 0.0
          %1424 = vmatpush2.msra.mxu0 0.0
          %1425 = vmatprep.subr.mxu0 0.0
          %1426 = vmatpush2.msra.mxu0 0.0
          %1427 = vmatprep.mubr.f32.mxu0 0.0
          %1428 = vmatmul.mubr.f32.gmra.mxu0 %v1361
          %v1429 = vpop.f32.mrf.mxu0
          %v1430 = vadd.f32 %v1359, %v1429
          %v1431 = vpop.f32.mrf.mxu0
          %1432 = vdwg.mxu0
          %v1433 = vmax.f32 %v1430, 0.0
          %v1434 = vlaneseq
          %v1435 = vand.u32 %v1434, 127
          %vm1436 = vcmp.lt.s32.totalorder %v1435, 6
          %v1437 = vsel %vm1436, %v1433, -1e+30
          %1438 = vmax.xlane.f32.xlu0 %v1437
          %v1439 = vpop.xlane.xlu0 %1438
          %v1440 = vsub.f32 %v1437, %v1439
          %v1441 = vmul.f32 %v1440, 1.442695
          %v1442 = vpow.pop %v1441
          %1443 = vadd.xlane.f32.xlu0 %v1442
          %v1444 = vpop.xlane.xlu0 %1443
          %v1445 = vlog2.pop %v1444
          %v1446 = vmul.f32 %v1445, 0.6931472
          %v1447 = vsub.f32 %v1440, %v1446
          %1448 = vst [vmem:[#allocation5] sm:$0xff] %v1447
        $region56: #{tpu_custom_call.1} parent=47 // pred_fallthru
          _
        // Predicated region
        $region57: #{tpu_custom_call.1} parent=47 // pred_check
          %p1449 = pneg %p184
        $region58: #{tpu_custom_call.1} parent=47 // pred_check_branch
          %1451 = sbr.rel (%p1449) target = $region60
        $region59: #{tpu_custom_call.1} parent=47 // pred_region
          %s1453 = ssub.s32 128, 128
          %1454 = vsyncadd [#allocation6], %s1453
          %s1456 = sshll.u32 [#allocation5], 4
          %s1457 = int_to_ptr.vmem [resolvable:$true] %s1456
          %1459 = dma.vmem_to_hbm [thread:$0]  %s1457, 128, %s7, [#allocation6]
        $region60: #{tpu_custom_call.1} parent=47 // pred_fallthru
          _
        // Predicated region
        $region61: #{tpu_custom_call.1} parent=47 // pred_check
          %p1460 = pneg %p184
        $region62: #{tpu_custom_call.1} parent=47 // pred_check_branch
          %1462 = sbr.rel (%p1460) target = $region64
        $region63: #{tpu_custom_call.1} parent=47 // pred_region
          %1463 = dma.done [#allocation6], 128
        $region64: #{tpu_custom_call.1} parent=47 // pred_fallthru
          _
      $region48: #{tpu_custom_call.1} parent=5 // pred_fallthru
        _
      %p1464 = scmp.le.s32.totalorder 2, %s14
      // Predicated region
      $region65: #{tpu_custom_call.1} parent=5 // pred_check
        %p1465 = pneg %p1464
      $region66: #{tpu_custom_call.1} parent=5 // pred_check_branch
        %1467 = sbr.rel (%p1465) target = $region68
      $region67: #{tpu_custom_call.1} parent=5 // pred_region
        %s1468 = ssub.s32 %s14, 2
      $region68: #{tpu_custom_call.1} parent=5 // pred_fallthru
        _
    $region6: #{tpu_custom_call.1} parent=1 // loop_footer
      %s18 = sadd.s32 1, %s14
    $region7: #{tpu_custom_call.1} parent=1 // loop_footer_branch
      %13 = sbr.rel target = $region3
    $region8: #{tpu_custom_call.1} parent=1 // loop_exit
      _
    %1469 = vsyncpa [#allocation6], 1
    %s1470 = scalar_lea.sflag [#allocation6], 1
    %1471 = vsyncpa %s1470, 1

</llo_original>
